<compile_context>
chip_gen: v6e
topology: v6e:2x2x1
jax: 0.10.0
libtpu: 0.0.40
codegen_flags: <defaults>
</compile_context>

<pallas_src>
import jax
import jax.numpy as jnp
from jax.experimental import pallas as pl
from jax.experimental.pallas import tpu as pltpu

_BN_EPS = 1e-5
_RESIDENT_VMEM_BUDGET = 20 << 20  # use the single-step all-resident path below this


def _block_step(x, w1, gamma, beta, w2, b2):
    """One ResBlock on an f32 activation; returns (new_x, r), both f32."""
    # ---- Linear 1 (no bias: absorbed by training-mode BN), bf16 MXU, f32 acc ----
    h = jnp.dot(x.astype(w1.dtype), w1, preferred_element_type=jnp.float32)

    # ---- BatchNorm1d (training-mode batch stats), one pass, fused affine ----
    inv_b = jnp.float32(1.0 / h.shape[0])
    mean = jnp.sum(h, axis=0, keepdims=True) * inv_b
    var = jnp.sum(h * h, axis=0, keepdims=True) * inv_b - mean * mean
    var = jnp.maximum(var, 0.0)  # guard one-pass cancellation -> no NaN in rsqrt
    scale = gamma.astype(jnp.float32) * jax.lax.rsqrt(var + _BN_EPS)
    shift = beta.astype(jnp.float32) - mean * scale

    # ---- ReLU fused with the BN scale/shift ----
    h = jnp.maximum(h * scale + shift, 0.0)

    # ---- Linear 2 ----
    r = jnp.dot(h.astype(w2.dtype), w2, preferred_element_type=jnp.float32)
    r = r + b2.astype(jnp.float32)
    return x + r, r


def _make_resident_kernel(nblocks, out_is_acc):
    """Single grid step: all blocks' params resident in VMEM, chain unrolled."""

    def kernel(x_ref, w1_ref, gamma_ref, beta_ref, w2_ref, b2_ref,
               xo_ref, r_ref, *scratch):
        acc_ref = xo_ref if out_is_acc else scratch[0]
        acc_ref[...] = x_ref[...].astype(jnp.float32)
        # nblocks is small; static unroll (live ranges are tiny at these shapes).
        for i in range(nblocks):
            new_x, r = _block_step(acc_ref[...], w1_ref[i], gamma_ref[i],
                                   beta_ref[i], w2_ref[i], b2_ref[i])
            acc_ref[...] = new_x
            r_ref[i] = r.astype(r_ref.dtype)          # lane-dense (B, D) store
        if not out_is_acc:
            xo_ref[...] = acc_ref[...].astype(xo_ref.dtype)

    return kernel


def _make_pipelined_kernel(out_is_acc):
    """grid=(nblocks,): block i+1's weights DMA-prefetched behind block i."""

    def kernel(x_ref, w1_ref, gamma_ref, beta_ref, w2_ref, b2_ref,
               xo_ref, r_ref, *scratch):
        acc_ref = xo_ref if out_is_acc else scratch[0]
        i = pl.program_id(0)

        @pl.when(i == 0)
        def _init():
            acc_ref[...] = x_ref[...].astype(jnp.float32)

        new_x, r = _block_step(acc_ref[...], w1_ref[0], gamma_ref[0],
                               beta_ref[0], w2_ref[0], b2_ref[0])
        acc_ref[...] = new_x                           # stays resident in VMEM
        r_ref[...] = r[None].astype(r_ref.dtype)       # lane-dense store

        if not out_is_acc:
            @pl.when(i == pl.num_programs(0) - 1)
            def _finalize():
                xo_ref[...] = new_x.astype(xo_ref.dtype)

    return kernel


def _vmem_limit_bytes(est_bytes):
    """Generation-aware VMEM limit with headroom (never the full capacity)."""
    try:
        cap = pltpu.get_tpu_info().vmem_capacity_bytes
    except Exception:
        cap = 64 << 20  # conservative fallback = v7x physical VMEM per TC
    return int(min(max(2 * est_bytes, 4 << 20), int(0.85 * cap)))


def residual_phi_forward(x, w1s, b1s, gammas, betas, w2s, b2s, *,
                         weight_dtype=jnp.bfloat16, mode="auto"):
    """Fused ResidualPhi forward.  Returns (x_out, rs) with rs: (nblocks, B, D).

    b1s is accepted for parameter parity with the PyTorch module but is not
    used: training-mode BatchNorm is invariant to a per-feature pre-BN shift.
    """
    del b1s
    nblocks, D, _ = w1s.shape
    B = x.shape[0]

    # One-time HBM-side prep: (out, in) -> (in, out) layout + bf16 MXU operands.
    w1t = jnp.swapaxes(w1s, -1, -2).astype(weight_dtype)
    w2t = jnp.swapaxes(w2s, -1, -2).astype(weight_dtype)

    x_item = jnp.dtype(x.dtype).itemsize
    w_item = jnp.dtype(weight_dtype).itemsize
    out_is_acc = (x.dtype == jnp.float32)  # accumulate directly in aliased output

    resident_est = (nblocks * 2 * D * D * w_item          # all weights
                    + nblocks * 3 * D * x_item            # gamma, beta, b2
                    + 2 * B * D * x_item                  # x in + x out
                    + (0 if out_is_acc else B * D * 4)    # f32 acc scratch
                    + nblocks * B * D * x_item)           # residual output
    pipelined_est = (2 * (2 * D * D * w_item + 3 * D * x_item)  # dbl-buf params
                     + 2 * B * D * x_item                        # x in + x out
                     + (0 if out_is_acc else B * D * 4)          # f32 acc scratch
                     + 2 * B * D * x_item)                       # dbl-buf r block

    if mode == "auto":
        mode = "resident" if resident_est <= _RESIDENT_VMEM_BUDGET else "pipelined"

    scratch_shapes = [] if out_is_acc else [pltpu.VMEM((B, D), jnp.float32)]

    if mode == "resident":
        full_mat = pl.BlockSpec((nblocks, D, D), lambda i: (0, 0, 0))
        full_vec = pl.BlockSpec((nblocks, 1, D), lambda i: (0, 0, 0))
        full_x = pl.BlockSpec((B, D), lambda i: (0, 0))
        grid_spec = pltpu.PrefetchScalarGridSpec(
            num_scalar_prefetch=0,
            grid=(1,),
            in_specs=[full_x, full_mat, full_vec, full_vec, full_mat, full_vec],
            out_specs=(full_x,
                       pl.BlockSpec((nblocks, B, D), lambda i: (0, 0, 0))),
            scratch_shapes=scratch_shapes,
        )
        kernel = _make_resident_kernel(nblocks, out_is_acc)
        est = resident_est
    else:
        per_block_mat = pl.BlockSpec((1, D, D), lambda i: (i, 0, 0))
        per_block_vec = pl.BlockSpec((1, 1, D), lambda i: (i, 0, 0))
        resident_x = pl.BlockSpec((B, D), lambda i: (0, 0))   # constant -> resident
        grid_spec = pltpu.PrefetchScalarGridSpec(
            num_scalar_prefetch=0,
            grid=(nblocks,),
            in_specs=[resident_x, per_block_mat, per_block_vec, per_block_vec,
                      per_block_mat, per_block_vec],
            out_specs=(resident_x,
                       pl.BlockSpec((1, B, D), lambda i: (i, 0, 0))),
            scratch_shapes=scratch_shapes,
        )
        kernel = _make_pipelined_kernel(out_is_acc)
        est = pipelined_est

    return pl.pallas_call(
        kernel,
        out_shape=(jax.ShapeDtypeStruct((B, D), x.dtype),
                   jax.ShapeDtypeStruct((nblocks, B, D), x.dtype)),
        grid_spec=grid_spec,
        input_output_aliases={0: 0},          # out = x + sum(r): reuse x's buffer
        compiler_params=pltpu.CompilerParams(
            # Chain is sequential (block i reads block i-1's output).
            dimension_semantics=("arbitrary",),
            vmem_limit_bytes=_vmem_limit_bytes(est),
        ),
    )(x, w1t, gammas, betas, w2t, b2s)


residual_phi_forward_jit = jax.jit(residual_phi_forward,
                                   static_argnames=("weight_dtype", "mode"))


def _init_stacked_params(key, nblocks, dim, dtype=jnp.float32):
    """Deterministic synthetic params, PyTorch layouts, stacked over blocks."""
    keys = jax.random.split(key, 4 * nblocks)
    bound = 1.0 / float(dim) ** 0.5
    u = lambda k, shape: jax.random.uniform(k, shape, dtype, -bound, bound)
    w1s = jnp.stack([u(keys[4 * i + 0], (dim, dim)) for i in range(nblocks)])
    b1s = jnp.stack([u(keys[4 * i + 1], (1, dim)) for i in range(nblocks)])
    gammas = jnp.ones((nblocks, 1, dim), dtype)
    betas = jnp.zeros((nblocks, 1, dim), dtype)
    w2s = jnp.stack([u(keys[4 * i + 2], (dim, dim)) for i in range(nblocks)])
    b2s = jnp.stack([u(keys[4 * i + 3], (1, dim)) for i in range(nblocks)])
    return w1s, b1s, gammas, betas, w2s, b2s


def _residual_phi_ref(x, w1s, b1s, gammas, betas, w2s, b2s):
    """Pure-JAX f32 reference, faithful to the PyTorch module (incl. b1)."""
    rs = []
    for i in range(w1s.shape[0]):
        h = x @ w1s[i].T + b1s[i]
        mean = jnp.mean(h, axis=0, keepdims=True)
        var = jnp.mean((h - mean) ** 2, axis=0, keepdims=True)
        h = (h - mean) / jnp.sqrt(var + _BN_EPS)
        h = h * gammas[i] + betas[i]
        h = jnp.maximum(h, 0.0)
        r = h @ w2s[i].T + b2s[i]
        x = x + r
        rs.append(r)
    return x, jnp.stack(rs)


if __name__ == "__main__":
    # Lane-dense demo shapes: dim % 128 == 0, batch % 8 == 0 (f32).
    nblocks, batch, dim = 4, 8, 128

    key = jax.random.PRNGKey(0)
    kx, kp = jax.random.split(key)
    x = jax.random.normal(kx, (batch, dim), jnp.float32)
    params = _init_stacked_params(kp, nblocks, dim)

    out_ref, rs_ref = _residual_phi_ref(x, *params)

    # Exercise both the small-shape all-resident path and the general
    # per-block-pipelined path.  Tolerances account for bf16 weights/operands
    # on the MXU (f32 accumulation).
    for mode in ("resident", "pipelined"):
        out, rs = residual_phi_forward_jit(x, *params, mode=mode)
        out = jax.block_until_ready(out)
        rs = jax.block_until_ready(rs)
        assert out.shape == (batch, dim) and rs.shape == (nblocks, batch, dim)
        assert jnp.allclose(rs, rs_ref, atol=5e-2, rtol=5e-2), f"residual mismatch ({mode})"
        assert jnp.allclose(out, out_ref, atol=5e-2, rtol=5e-2), f"output mismatch ({mode})"

    print("KERNEL_OK")
</pallas_src>

<mosaic_0001>
module attributes {stable_mosaic.version = 11 : i64} {
  func.func @kernel(%arg0: i32, %arg1: memref<8x128xf32, #tpu.memory_space<vmem>>, %arg2: memref<4x128x128xbf16, #tpu.memory_space<vmem>>, %arg3: memref<4x1x128xf32, #tpu.memory_space<vmem>>, %arg4: memref<4x1x128xf32, #tpu.memory_space<vmem>>, %arg5: memref<4x128x128xbf16, #tpu.memory_space<vmem>>, %arg6: memref<4x1x128xf32, #tpu.memory_space<vmem>>, %arg7: memref<8x128xf32, #tpu.memory_space<vmem>>, %arg8: memref<4x8x128xf32, #tpu.memory_space<vmem>>) attributes {dimension_semantics = [#tpu.dimension_semantics<arbitrary>], iteration_bounds = array<i64: 1>, scalar_prefetch = 0 : i64, scratch_operands = 0 : i64, tpu.core_type = #tpu.core_type<tc>, window_params = [{pipeline_mode = #tpu.pipeline_mode<synchronous>, transform_indices = @transform_0, window_bounds = array<i64: 8, 128>}, {pipeline_mode = #tpu.pipeline_mode<synchronous>, transform_indices = @transform_1, window_bounds = array<i64: 4, 128, 128>}, {pipeline_mode = #tpu.pipeline_mode<synchronous>, transform_indices = @transform_2, window_bounds = array<i64: 4, 1, 128>}, {pipeline_mode = #tpu.pipeline_mode<synchronous>, transform_indices = @transform_3, window_bounds = array<i64: 4, 1, 128>}, {pipeline_mode = #tpu.pipeline_mode<synchronous>, transform_indices = @transform_4, window_bounds = array<i64: 4, 128, 128>}, {pipeline_mode = #tpu.pipeline_mode<synchronous>, transform_indices = @transform_5, window_bounds = array<i64: 4, 1, 128>}, {pipeline_mode = #tpu.pipeline_mode<synchronous>, transform_indices = @transform_6, window_bounds = array<i64: 8, 128>}, {pipeline_mode = #tpu.pipeline_mode<synchronous>, transform_indices = @transform_7, window_bounds = array<i64: 4, 8, 128>}]} {
    %c0 = arith.constant 0 : index
    %c0_0 = arith.constant 0 : index
    %0 = vector.load %arg1[%c0, %c0_0] : memref<8x128xf32, #tpu.memory_space<vmem>>, vector<8x128xf32>
    %c0_1 = arith.constant 0 : index
    %c0_2 = arith.constant 0 : index
    %1 = vector.load %arg7[%c0_1, %c0_2] : memref<8x128xf32, #tpu.memory_space<vmem>>, vector<8x128xf32>
    tpu.vector_store %arg7[%c0_1, %c0_2], %0 {strides = array<i32>} : memref<8x128xf32, #tpu.memory_space<vmem>>, vector<8x128xf32>,
    %c0_3 = arith.constant 0 : index
    %c0_4 = arith.constant 0 : index
    %2 = vector.load %arg7[%c0_3, %c0_4] : memref<8x128xf32, #tpu.memory_space<vmem>>, vector<8x128xf32>
    %c0_5 = arith.constant 0 : index
    %c0_6 = arith.constant 0 : index
    %c0_7 = arith.constant 0 : index
    %3 = vector.load %arg2[%c0_5, %c0_6, %c0_7] : memref<4x128x128xbf16, #tpu.memory_space<vmem>>, vector<1x128x128xbf16>
    %4 = vector.shape_cast %3 : vector<1x128x128xbf16> to vector<128x128xbf16>
    %c0_8 = arith.constant 0 : index
    %c0_9 = arith.constant 0 : index
    %c0_10 = arith.constant 0 : index
    %5 = vector.load %arg3[%c0_8, %c0_9, %c0_10] : memref<4x1x128xf32, #tpu.memory_space<vmem>>, vector<1x1x128xf32>
    %6 = vector.shape_cast %5 : vector<1x1x128xf32> to vector<1x128xf32>
    %c0_11 = arith.constant 0 : index
    %c0_12 = arith.constant 0 : index
    %c0_13 = arith.constant 0 : index
    %7 = vector.load %arg4[%c0_11, %c0_12, %c0_13] : memref<4x1x128xf32, #tpu.memory_space<vmem>>, vector<1x1x128xf32>
    %8 = vector.shape_cast %7 : vector<1x1x128xf32> to vector<1x128xf32>
    %c0_14 = arith.constant 0 : index
    %c0_15 = arith.constant 0 : index
    %c0_16 = arith.constant 0 : index
    %9 = vector.load %arg5[%c0_14, %c0_15, %c0_16] : memref<4x128x128xbf16, #tpu.memory_space<vmem>>, vector<1x128x128xbf16>
    %10 = vector.shape_cast %9 : vector<1x128x128xbf16> to vector<128x128xbf16>
    %c0_17 = arith.constant 0 : index
    %c0_18 = arith.constant 0 : index
    %c0_19 = arith.constant 0 : index
    %11 = vector.load %arg6[%c0_17, %c0_18, %c0_19] : memref<4x1x128xf32, #tpu.memory_space<vmem>>, vector<1x1x128xf32>
    %12 = vector.shape_cast %11 : vector<1x1x128xf32> to vector<1x128xf32>
    %13 = arith.truncf %2 : vector<8x128xf32> to vector<8x128xbf16>
    %cst = arith.constant dense<0.000000e+00> : vector<8x128xf32>
    %14 = tpu.matmul %13, %4, %cst {dimension_numbers = #tpu.dot_dimension_numbers<[1], [0], [0], [1], [0, 0, 1, 1], [], []>} : vector<8x128xbf16>, vector<128x128xbf16>, vector<8x128xf32> -> vector<8x128xf32>
    %cst_20 = arith.constant dense<0.000000e+00> : vector<128xf32>
    %15 = vector.multi_reduction <add>, %14, %cst_20 [0] : vector<8x128xf32> to vector<128xf32>
    %16 = vector.shape_cast %15 : vector<128xf32> to vector<1x128xf32>
    %cst_21 = arith.constant 1.250000e-01 : f32
    %17 = vector.broadcast %cst_21 : f32 to vector<1x128xf32>
    %18 = arith.mulf %16, %17 : vector<1x128xf32>
    %19 = arith.mulf %14, %14 : vector<8x128xf32>
    %cst_22 = arith.constant dense<0.000000e+00> : vector<128xf32>
    %20 = vector.multi_reduction <add>, %19, %cst_22 [0] : vector<8x128xf32> to vector<128xf32>
    %21 = vector.shape_cast %20 : vector<128xf32> to vector<1x128xf32>
    %cst_23 = arith.constant 1.250000e-01 : f32
    %22 = vector.broadcast %cst_23 : f32 to vector<1x128xf32>
    %23 = arith.mulf %21, %22 : vector<1x128xf32>
    %24 = arith.mulf %18, %18 : vector<1x128xf32>
    %25 = arith.subf %23, %24 : vector<1x128xf32>
    %cst_24 = arith.constant 0.000000e+00 : f32
    %26 = vector.broadcast %cst_24 : f32 to vector<1x128xf32>
    %27 = arith.maximumf %25, %26 : vector<1x128xf32>
    %cst_25 = arith.constant 9.99999974E-6 : f32
    %28 = vector.broadcast %cst_25 : f32 to vector<1x128xf32>
    %29 = arith.addf %27, %28 : vector<1x128xf32>
    %30 = math.rsqrt %29 : vector<1x128xf32>
    %31 = arith.mulf %6, %30 : vector<1x128xf32>
    %32 = arith.mulf %18, %31 : vector<1x128xf32>
    %33 = arith.subf %8, %32 : vector<1x128xf32>
    %34 = vector.broadcast %31 : vector<1x128xf32> to vector<8x128xf32>
    %35 = arith.mulf %14, %34 : vector<8x128xf32>
    %36 = vector.broadcast %33 : vector<1x128xf32> to vector<8x128xf32>
    %37 = arith.addf %35, %36 : vector<8x128xf32>
    %cst_26 = arith.constant 0.000000e+00 : f32
    %38 = vector.broadcast %cst_26 : f32 to vector<8x128xf32>
    %39 = arith.maximumf %37, %38 : vector<8x128xf32>
    %40 = arith.truncf %39 : vector<8x128xf32> to vector<8x128xbf16>
    %cst_27 = arith.constant dense<0.000000e+00> : vector<8x128xf32>
    %41 = tpu.matmul %40, %10, %cst_27 {dimension_numbers = #tpu.dot_dimension_numbers<[1], [0], [0], [1], [0, 0, 1, 1], [], []>} : vector<8x128xbf16>, vector<128x128xbf16>, vector<8x128xf32> -> vector<8x128xf32>
    %42 = vector.broadcast %12 : vector<1x128xf32> to vector<8x128xf32>
    %43 = arith.addf %41, %42 : vector<8x128xf32>
    %44 = arith.addf %2, %43 : vector<8x128xf32>
    %c0_28 = arith.constant 0 : index
    %c0_29 = arith.constant 0 : index
    %45 = vector.load %arg7[%c0_28, %c0_29] : memref<8x128xf32, #tpu.memory_space<vmem>>, vector<8x128xf32>
    tpu.vector_store %arg7[%c0_28, %c0_29], %44 {strides = array<i32>} : memref<8x128xf32, #tpu.memory_space<vmem>>, vector<8x128xf32>,
    %c0_30 = arith.constant 0 : index
    %c0_31 = arith.constant 0 : index
    %c0_32 = arith.constant 0 : index
    %46 = vector.load %arg8[%c0_30, %c0_31, %c0_32] : memref<4x8x128xf32, #tpu.memory_space<vmem>>, vector<1x8x128xf32>
    %47 = vector.shape_cast %46 : vector<1x8x128xf32> to vector<8x128xf32>
    %48 = vector.shape_cast %43 : vector<8x128xf32> to vector<1x8x128xf32>
    tpu.vector_store %arg8[%c0_30, %c0_31, %c0_32], %48 {strides = array<i32>} : memref<4x8x128xf32, #tpu.memory_space<vmem>>, vector<1x8x128xf32>,
    %c0_33 = arith.constant 0 : index
    %c0_34 = arith.constant 0 : index
    %49 = vector.load %arg7[%c0_33, %c0_34] : memref<8x128xf32, #tpu.memory_space<vmem>>, vector<8x128xf32>
    %c1 = arith.constant 1 : index
    %c0_35 = arith.constant 0 : index
    %c0_36 = arith.constant 0 : index
    %50 = vector.load %arg2[%c1, %c0_35, %c0_36] : memref<4x128x128xbf16, #tpu.memory_space<vmem>>, vector<1x128x128xbf16>
    %51 = vector.shape_cast %50 : vector<1x128x128xbf16> to vector<128x128xbf16>
    %c1_37 = arith.constant 1 : index
    %c0_38 = arith.constant 0 : index
    %c0_39 = arith.constant 0 : index
    %52 = vector.load %arg3[%c1_37, %c0_38, %c0_39] : memref<4x1x128xf32, #tpu.memory_space<vmem>>, vector<1x1x128xf32>
    %53 = vector.shape_cast %52 : vector<1x1x128xf32> to vector<1x128xf32>
    %c1_40 = arith.constant 1 : index
    %c0_41 = arith.constant 0 : index
    %c0_42 = arith.constant 0 : index
    %54 = vector.load %arg4[%c1_40, %c0_41, %c0_42] : memref<4x1x128xf32, #tpu.memory_space<vmem>>, vector<1x1x128xf32>
    %55 = vector.shape_cast %54 : vector<1x1x128xf32> to vector<1x128xf32>
    %c1_43 = arith.constant 1 : index
    %c0_44 = arith.constant 0 : index
    %c0_45 = arith.constant 0 : index
    %56 = vector.load %arg5[%c1_43, %c0_44, %c0_45] : memref<4x128x128xbf16, #tpu.memory_space<vmem>>, vector<1x128x128xbf16>
    %57 = vector.shape_cast %56 : vector<1x128x128xbf16> to vector<128x128xbf16>
    %c1_46 = arith.constant 1 : index
    %c0_47 = arith.constant 0 : index
    %c0_48 = arith.constant 0 : index
    %58 = vector.load %arg6[%c1_46, %c0_47, %c0_48] : memref<4x1x128xf32, #tpu.memory_space<vmem>>, vector<1x1x128xf32>
    %59 = vector.shape_cast %58 : vector<1x1x128xf32> to vector<1x128xf32>
    %60 = arith.truncf %49 : vector<8x128xf32> to vector<8x128xbf16>
    %cst_49 = arith.constant dense<0.000000e+00> : vector<8x128xf32>
    %61 = tpu.matmul %60, %51, %cst_49 {dimension_numbers = #tpu.dot_dimension_numbers<[1], [0], [0], [1], [0, 0, 1, 1], [], []>} : vector<8x128xbf16>, vector<128x128xbf16>, vector<8x128xf32> -> vector<8x128xf32>
    %cst_50 = arith.constant dense<0.000000e+00> : vector<128xf32>
    %62 = vector.multi_reduction <add>, %61, %cst_50 [0] : vector<8x128xf32> to vector<128xf32>
    %63 = vector.shape_cast %62 : vector<128xf32> to vector<1x128xf32>
    %cst_51 = arith.constant 1.250000e-01 : f32
    %64 = vector.broadcast %cst_51 : f32 to vector<1x128xf32>
    %65 = arith.mulf %63, %64 : vector<1x128xf32>
    %66 = arith.mulf %61, %61 : vector<8x128xf32>
    %cst_52 = arith.constant dense<0.000000e+00> : vector<128xf32>
    %67 = vector.multi_reduction <add>, %66, %cst_52 [0] : vector<8x128xf32> to vector<128xf32>
    %68 = vector.shape_cast %67 : vector<128xf32> to vector<1x128xf32>
    %cst_53 = arith.constant 1.250000e-01 : f32
    %69 = vector.broadcast %cst_53 : f32 to vector<1x128xf32>
    %70 = arith.mulf %68, %69 : vector<1x128xf32>
    %71 = arith.mulf %65, %65 : vector<1x128xf32>
    %72 = arith.subf %70, %71 : vector<1x128xf32>
    %cst_54 = arith.constant 0.000000e+00 : f32
    %73 = vector.broadcast %cst_54 : f32 to vector<1x128xf32>
    %74 = arith.maximumf %72, %73 : vector<1x128xf32>
    %cst_55 = arith.constant 9.99999974E-6 : f32
    %75 = vector.broadcast %cst_55 : f32 to vector<1x128xf32>
    %76 = arith.addf %74, %75 : vector<1x128xf32>
    %77 = math.rsqrt %76 : vector<1x128xf32>
    %78 = arith.mulf %53, %77 : vector<1x128xf32>
    %79 = arith.mulf %65, %78 : vector<1x128xf32>
    %80 = arith.subf %55, %79 : vector<1x128xf32>
    %81 = vector.broadcast %78 : vector<1x128xf32> to vector<8x128xf32>
    %82 = arith.mulf %61, %81 : vector<8x128xf32>
    %83 = vector.broadcast %80 : vector<1x128xf32> to vector<8x128xf32>
    %84 = arith.addf %82, %83 : vector<8x128xf32>
    %cst_56 = arith.constant 0.000000e+00 : f32
    %85 = vector.broadcast %cst_56 : f32 to vector<8x128xf32>
    %86 = arith.maximumf %84, %85 : vector<8x128xf32>
    %87 = arith.truncf %86 : vector<8x128xf32> to vector<8x128xbf16>
    %cst_57 = arith.constant dense<0.000000e+00> : vector<8x128xf32>
    %88 = tpu.matmul %87, %57, %cst_57 {dimension_numbers = #tpu.dot_dimension_numbers<[1], [0], [0], [1], [0, 0, 1, 1], [], []>} : vector<8x128xbf16>, vector<128x128xbf16>, vector<8x128xf32> -> vector<8x128xf32>
    %89 = vector.broadcast %59 : vector<1x128xf32> to vector<8x128xf32>
    %90 = arith.addf %88, %89 : vector<8x128xf32>
    %91 = arith.addf %49, %90 : vector<8x128xf32>
    %c0_58 = arith.constant 0 : index
    %c0_59 = arith.constant 0 : index
    %92 = vector.load %arg7[%c0_58, %c0_59] : memref<8x128xf32, #tpu.memory_space<vmem>>, vector<8x128xf32>
    tpu.vector_store %arg7[%c0_58, %c0_59], %91 {strides = array<i32>} : memref<8x128xf32, #tpu.memory_space<vmem>>, vector<8x128xf32>,
    %c1_60 = arith.constant 1 : index
    %c0_61 = arith.constant 0 : index
    %c0_62 = arith.constant 0 : index
    %93 = vector.load %arg8[%c1_60, %c0_61, %c0_62] : memref<4x8x128xf32, #tpu.memory_space<vmem>>, vector<1x8x128xf32>
    %94 = vector.shape_cast %93 : vector<1x8x128xf32> to vector<8x128xf32>
    %95 = vector.shape_cast %90 : vector<8x128xf32> to vector<1x8x128xf32>
    tpu.vector_store %arg8[%c1_60, %c0_61, %c0_62], %95 {strides = array<i32>} : memref<4x8x128xf32, #tpu.memory_space<vmem>>, vector<1x8x128xf32>,
    %c0_63 = arith.constant 0 : index
    %c0_64 = arith.constant 0 : index
    %96 = vector.load %arg7[%c0_63, %c0_64] : memref<8x128xf32, #tpu.memory_space<vmem>>, vector<8x128xf32>
    %c2 = arith.constant 2 : index
    %c0_65 = arith.constant 0 : index
    %c0_66 = arith.constant 0 : index
    %97 = vector.load %arg2[%c2, %c0_65, %c0_66] : memref<4x128x128xbf16, #tpu.memory_space<vmem>>, vector<1x128x128xbf16>
    %98 = vector.shape_cast %97 : vector<1x128x128xbf16> to vector<128x128xbf16>
    %c2_67 = arith.constant 2 : index
    %c0_68 = arith.constant 0 : index
    %c0_69 = arith.constant 0 : index
    %99 = vector.load %arg3[%c2_67, %c0_68, %c0_69] : memref<4x1x128xf32, #tpu.memory_space<vmem>>, vector<1x1x128xf32>
    %100 = vector.shape_cast %99 : vector<1x1x128xf32> to vector<1x128xf32>
    %c2_70 = arith.constant 2 : index
    %c0_71 = arith.constant 0 : index
    %c0_72 = arith.constant 0 : index
    %101 = vector.load %arg4[%c2_70, %c0_71, %c0_72] : memref<4x1x128xf32, #tpu.memory_space<vmem>>, vector<1x1x128xf32>
    %102 = vector.shape_cast %101 : vector<1x1x128xf32> to vector<1x128xf32>
    %c2_73 = arith.constant 2 : index
    %c0_74 = arith.constant 0 : index
    %c0_75 = arith.constant 0 : index
    %103 = vector.load %arg5[%c2_73, %c0_74, %c0_75] : memref<4x128x128xbf16, #tpu.memory_space<vmem>>, vector<1x128x128xbf16>
    %104 = vector.shape_cast %103 : vector<1x128x128xbf16> to vector<128x128xbf16>
    %c2_76 = arith.constant 2 : index
    %c0_77 = arith.constant 0 : index
    %c0_78 = arith.constant 0 : index
    %105 = vector.load %arg6[%c2_76, %c0_77, %c0_78] : memref<4x1x128xf32, #tpu.memory_space<vmem>>, vector<1x1x128xf32>
    %106 = vector.shape_cast %105 : vector<1x1x128xf32> to vector<1x128xf32>
    %107 = arith.truncf %96 : vector<8x128xf32> to vector<8x128xbf16>
    %cst_79 = arith.constant dense<0.000000e+00> : vector<8x128xf32>
    %108 = tpu.matmul %107, %98, %cst_79 {dimension_numbers = #tpu.dot_dimension_numbers<[1], [0], [0], [1], [0, 0, 1, 1], [], []>} : vector<8x128xbf16>, vector<128x128xbf16>, vector<8x128xf32> -> vector<8x128xf32>
    %cst_80 = arith.constant dense<0.000000e+00> : vector<128xf32>
    %109 = vector.multi_reduction <add>, %108, %cst_80 [0] : vector<8x128xf32> to vector<128xf32>
    %110 = vector.shape_cast %109 : vector<128xf32> to vector<1x128xf32>
    %cst_81 = arith.constant 1.250000e-01 : f32
    %111 = vector.broadcast %cst_81 : f32 to vector<1x128xf32>
    %112 = arith.mulf %110, %111 : vector<1x128xf32>
    %113 = arith.mulf %108, %108 : vector<8x128xf32>
    %cst_82 = arith.constant dense<0.000000e+00> : vector<128xf32>
    %114 = vector.multi_reduction <add>, %113, %cst_82 [0] : vector<8x128xf32> to vector<128xf32>
    %115 = vector.shape_cast %114 : vector<128xf32> to vector<1x128xf32>
    %cst_83 = arith.constant 1.250000e-01 : f32
    %116 = vector.broadcast %cst_83 : f32 to vector<1x128xf32>
    %117 = arith.mulf %115, %116 : vector<1x128xf32>
    %118 = arith.mulf %112, %112 : vector<1x128xf32>
    %119 = arith.subf %117, %118 : vector<1x128xf32>
    %cst_84 = arith.constant 0.000000e+00 : f32
    %120 = vector.broadcast %cst_84 : f32 to vector<1x128xf32>
    %121 = arith.maximumf %119, %120 : vector<1x128xf32>
    %cst_85 = arith.constant 9.99999974E-6 : f32
    %122 = vector.broadcast %cst_85 : f32 to vector<1x128xf32>
    %123 = arith.addf %121, %122 : vector<1x128xf32>
    %124 = math.rsqrt %123 : vector<1x128xf32>
    %125 = arith.mulf %100, %124 : vector<1x128xf32>
    %126 = arith.mulf %112, %125 : vector<1x128xf32>
    %127 = arith.subf %102, %126 : vector<1x128xf32>
    %128 = vector.broadcast %125 : vector<1x128xf32> to vector<8x128xf32>
    %129 = arith.mulf %108, %128 : vector<8x128xf32>
    %130 = vector.broadcast %127 : vector<1x128xf32> to vector<8x128xf32>
    %131 = arith.addf %129, %130 : vector<8x128xf32>
    %cst_86 = arith.constant 0.000000e+00 : f32
    %132 = vector.broadcast %cst_86 : f32 to vector<8x128xf32>
    %133 = arith.maximumf %131, %132 : vector<8x128xf32>
    %134 = arith.truncf %133 : vector<8x128xf32> to vector<8x128xbf16>
    %cst_87 = arith.constant dense<0.000000e+00> : vector<8x128xf32>
    %135 = tpu.matmul %134, %104, %cst_87 {dimension_numbers = #tpu.dot_dimension_numbers<[1], [0], [0], [1], [0, 0, 1, 1], [], []>} : vector<8x128xbf16>, vector<128x128xbf16>, vector<8x128xf32> -> vector<8x128xf32>
    %136 = vector.broadcast %106 : vector<1x128xf32> to vector<8x128xf32>
    %137 = arith.addf %135, %136 : vector<8x128xf32>
    %138 = arith.addf %96, %137 : vector<8x128xf32>
    %c0_88 = arith.constant 0 : index
    %c0_89 = arith.constant 0 : index
    %139 = vector.load %arg7[%c0_88, %c0_89] : memref<8x128xf32, #tpu.memory_space<vmem>>, vector<8x128xf32>
    tpu.vector_store %arg7[%c0_88, %c0_89], %138 {strides = array<i32>} : memref<8x128xf32, #tpu.memory_space<vmem>>, vector<8x128xf32>,
    %c2_90 = arith.constant 2 : index
    %c0_91 = arith.constant 0 : index
    %c0_92 = arith.constant 0 : index
    %140 = vector.load %arg8[%c2_90, %c0_91, %c0_92] : memref<4x8x128xf32, #tpu.memory_space<vmem>>, vector<1x8x128xf32>
    %141 = vector.shape_cast %140 : vector<1x8x128xf32> to vector<8x128xf32>
    %142 = vector.shape_cast %137 : vector<8x128xf32> to vector<1x8x128xf32>
    tpu.vector_store %arg8[%c2_90, %c0_91, %c0_92], %142 {strides = array<i32>} : memref<4x8x128xf32, #tpu.memory_space<vmem>>, vector<1x8x128xf32>,
    %c0_93 = arith.constant 0 : index
    %c0_94 = arith.constant 0 : index
    %143 = vector.load %arg7[%c0_93, %c0_94] : memref<8x128xf32, #tpu.memory_space<vmem>>, vector<8x128xf32>
    %c3 = arith.constant 3 : index
    %c0_95 = arith.constant 0 : index
    %c0_96 = arith.constant 0 : index
    %144 = vector.load %arg2[%c3, %c0_95, %c0_96] : memref<4x128x128xbf16, #tpu.memory_space<vmem>>, vector<1x128x128xbf16>
    %145 = vector.shape_cast %144 : vector<1x128x128xbf16> to vector<128x128xbf16>
    %c3_97 = arith.constant 3 : index
    %c0_98 = arith.constant 0 : index
    %c0_99 = arith.constant 0 : index
    %146 = vector.load %arg3[%c3_97, %c0_98, %c0_99] : memref<4x1x128xf32, #tpu.memory_space<vmem>>, vector<1x1x128xf32>
    %147 = vector.shape_cast %146 : vector<1x1x128xf32> to vector<1x128xf32>
    %c3_100 = arith.constant 3 : index
    %c0_101 = arith.constant 0 : index
    %c0_102 = arith.constant 0 : index
    %148 = vector.load %arg4[%c3_100, %c0_101, %c0_102] : memref<4x1x128xf32, #tpu.memory_space<vmem>>, vector<1x1x128xf32>
    %149 = vector.shape_cast %148 : vector<1x1x128xf32> to vector<1x128xf32>
    %c3_103 = arith.constant 3 : index
    %c0_104 = arith.constant 0 : index
    %c0_105 = arith.constant 0 : index
    %150 = vector.load %arg5[%c3_103, %c0_104, %c0_105] : memref<4x128x128xbf16, #tpu.memory_space<vmem>>, vector<1x128x128xbf16>
    %151 = vector.shape_cast %150 : vector<1x128x128xbf16> to vector<128x128xbf16>
    %c3_106 = arith.constant 3 : index
    %c0_107 = arith.constant 0 : index
    %c0_108 = arith.constant 0 : index
    %152 = vector.load %arg6[%c3_106, %c0_107, %c0_108] : memref<4x1x128xf32, #tpu.memory_space<vmem>>, vector<1x1x128xf32>
    %153 = vector.shape_cast %152 : vector<1x1x128xf32> to vector<1x128xf32>
    %154 = arith.truncf %143 : vector<8x128xf32> to vector<8x128xbf16>
    %cst_109 = arith.constant dense<0.000000e+00> : vector<8x128xf32>
    %155 = tpu.matmul %154, %145, %cst_109 {dimension_numbers = #tpu.dot_dimension_numbers<[1], [0], [0], [1], [0, 0, 1, 1], [], []>} : vector<8x128xbf16>, vector<128x128xbf16>, vector<8x128xf32> -> vector<8x128xf32>
    %cst_110 = arith.constant dense<0.000000e+00> : vector<128xf32>
    %156 = vector.multi_reduction <add>, %155, %cst_110 [0] : vector<8x128xf32> to vector<128xf32>
    %157 = vector.shape_cast %156 : vector<128xf32> to vector<1x128xf32>
    %cst_111 = arith.constant 1.250000e-01 : f32
    %158 = vector.broadcast %cst_111 : f32 to vector<1x128xf32>
    %159 = arith.mulf %157, %158 : vector<1x128xf32>
    %160 = arith.mulf %155, %155 : vector<8x128xf32>
    %cst_112 = arith.constant dense<0.000000e+00> : vector<128xf32>
    %161 = vector.multi_reduction <add>, %160, %cst_112 [0] : vector<8x128xf32> to vector<128xf32>
    %162 = vector.shape_cast %161 : vector<128xf32> to vector<1x128xf32>
    %cst_113 = arith.constant 1.250000e-01 : f32
    %163 = vector.broadcast %cst_113 : f32 to vector<1x128xf32>
    %164 = arith.mulf %162, %163 : vector<1x128xf32>
    %165 = arith.mulf %159, %159 : vector<1x128xf32>
    %166 = arith.subf %164, %165 : vector<1x128xf32>
    %cst_114 = arith.constant 0.000000e+00 : f32
    %167 = vector.broadcast %cst_114 : f32 to vector<1x128xf32>
    %168 = arith.maximumf %166, %167 : vector<1x128xf32>
    %cst_115 = arith.constant 9.99999974E-6 : f32
    %169 = vector.broadcast %cst_115 : f32 to vector<1x128xf32>
    %170 = arith.addf %168, %169 : vector<1x128xf32>
    %171 = math.rsqrt %170 : vector<1x128xf32>
    %172 = arith.mulf %147, %171 : vector<1x128xf32>
    %173 = arith.mulf %159, %172 : vector<1x128xf32>
    %174 = arith.subf %149, %173 : vector<1x128xf32>
    %175 = vector.broadcast %172 : vector<1x128xf32> to vector<8x128xf32>
    %176 = arith.mulf %155, %175 : vector<8x128xf32>
    %177 = vector.broadcast %174 : vector<1x128xf32> to vector<8x128xf32>
    %178 = arith.addf %176, %177 : vector<8x128xf32>
    %cst_116 = arith.constant 0.000000e+00 : f32
    %179 = vector.broadcast %cst_116 : f32 to vector<8x128xf32>
    %180 = arith.maximumf %178, %179 : vector<8x128xf32>
    %181 = arith.truncf %180 : vector<8x128xf32> to vector<8x128xbf16>
    %cst_117 = arith.constant dense<0.000000e+00> : vector<8x128xf32>
    %182 = tpu.matmul %181, %151, %cst_117 {dimension_numbers = #tpu.dot_dimension_numbers<[1], [0], [0], [1], [0, 0, 1, 1], [], []>} : vector<8x128xbf16>, vector<128x128xbf16>, vector<8x128xf32> -> vector<8x128xf32>
    %183 = vector.broadcast %153 : vector<1x128xf32> to vector<8x128xf32>
    %184 = arith.addf %182, %183 : vector<8x128xf32>
    %185 = arith.addf %143, %184 : vector<8x128xf32>
    %c0_118 = arith.constant 0 : index
    %c0_119 = arith.constant 0 : index
    %186 = vector.load %arg7[%c0_118, %c0_119] : memref<8x128xf32, #tpu.memory_space<vmem>>, vector<8x128xf32>
    tpu.vector_store %arg7[%c0_118, %c0_119], %185 {strides = array<i32>} : memref<8x128xf32, #tpu.memory_space<vmem>>, vector<8x128xf32>,
    %c3_120 = arith.constant 3 : index
    %c0_121 = arith.constant 0 : index
    %c0_122 = arith.constant 0 : index
    %187 = vector.load %arg8[%c3_120, %c0_121, %c0_122] : memref<4x8x128xf32, #tpu.memory_space<vmem>>, vector<1x8x128xf32>
    %188 = vector.shape_cast %187 : vector<1x8x128xf32> to vector<8x128xf32>
    %189 = vector.shape_cast %184 : vector<8x128xf32> to vector<1x8x128xf32>
    tpu.vector_store %arg8[%c3_120, %c0_121, %c0_122], %189 {strides = array<i32>} : memref<4x8x128xf32, #tpu.memory_space<vmem>>, vector<1x8x128xf32>,
    return
  }
  func.func @transform_0(%arg0: i32) -> (i32, i32) {
    %c0_i32 = arith.constant 0 : i32
    %c0_i32_0 = arith.constant 0 : i32
    %c0_i32_1 = arith.constant 0 : i32
    return %c0_i32, %c0_i32_0 : i32, i32
  }
  func.func @transform_1(%arg0: i32) -> (i32, i32, i32) {
    %c0_i32 = arith.constant 0 : i32
    %c0_i32_0 = arith.constant 0 : i32
    %c0_i32_1 = arith.constant 0 : i32
    %c0_i32_2 = arith.constant 0 : i32
    return %c0_i32, %c0_i32_0, %c0_i32_1 : i32, i32, i32
  }
  func.func @transform_2(%arg0: i32) -> (i32, i32, i32) {
    %c0_i32 = arith.constant 0 : i32
    %c0_i32_0 = arith.constant 0 : i32
    %c0_i32_1 = arith.constant 0 : i32
    %c0_i32_2 = arith.constant 0 : i32
    return %c0_i32, %c0_i32_0, %c0_i32_1 : i32, i32, i32
  }
  func.func @transform_3(%arg0: i32) -> (i32, i32, i32) {
    %c0_i32 = arith.constant 0 : i32
    %c0_i32_0 = arith.constant 0 : i32
    %c0_i32_1 = arith.constant 0 : i32
    %c0_i32_2 = arith.constant 0 : i32
    return %c0_i32, %c0_i32_0, %c0_i32_1 : i32, i32, i32
  }
  func.func @transform_4(%arg0: i32) -> (i32, i32, i32) {
    %c0_i32 = arith.constant 0 : i32
    %c0_i32_0 = arith.constant 0 : i32
    %c0_i32_1 = arith.constant 0 : i32
    %c0_i32_2 = arith.constant 0 : i32
    return %c0_i32, %c0_i32_0, %c0_i32_1 : i32, i32, i32
  }
  func.func @transform_5(%arg0: i32) -> (i32, i32, i32) {
    %c0_i32 = arith.constant 0 : i32
    %c0_i32_0 = arith.constant 0 : i32
    %c0_i32_1 = arith.constant 0 : i32
    %c0_i32_2 = arith.constant 0 : i32
    return %c0_i32, %c0_i32_0, %c0_i32_1 : i32, i32, i32
  }
  func.func @transform_6(%arg0: i32) -> (i32, i32) {
    %c0_i32 = arith.constant 0 : i32
    %c0_i32_0 = arith.constant 0 : i32
    %c0_i32_1 = arith.constant 0 : i32
    return %c0_i32, %c0_i32_0 : i32, i32
  }
  func.func @transform_7(%arg0: i32) -> (i32, i32, i32) {
    %c0_i32 = arith.constant 0 : i32
    %c0_i32_0 = arith.constant 0 : i32
    %c0_i32_1 = arith.constant 0 : i32
    %c0_i32_2 = arith.constant 0 : i32
    return %c0_i32, %c0_i32_0, %c0_i32_1 : i32, i32, i32
  }
}

</mosaic_0001>

<llo_original>
// kernel: residual_phi_forward.1
$region0: #{residual_phi_forward.1}
  #allocation0 [shape = 'u32[]', space=smem, size = 0x4, offset = 0x4, fixed_abs, tag = 'smem constant byte address 0x4 - core index']
  #allocation1 [shape = 'u32[144,128]{1,0:T(1,128)}', space=vmem, size = 0x12000, scoped, tag = 'internal scratch']
  %s0 = inlined_call_operand.hbm [shape: f32[8,128], index: 0, kind: input, shape index: {}, may-alias: {0,6}]
  %s1 = inlined_call_operand.vmem [shape: bf16[4,128,128], index: 1, kind: input, shape index: {}]
  %s2 = inlined_call_operand.vmem [shape: f32[4,1,128], index: 2, kind: input, shape index: {}]
  %s3 = inlined_call_operand.vmem [shape: f32[4,1,128], index: 3, kind: input, shape index: {}]
  %s4 = inlined_call_operand.vmem [shape: bf16[4,128,128], index: 4, kind: input, shape index: {}]
  %s5 = inlined_call_operand.vmem [shape: f32[4,1,128], index: 5, kind: input, shape index: {}]
  %s6 = inlined_call_operand.hbm [shape: f32[8,128], index: 6, kind: output, shape index: {0}, may-alias: {0,6}]
  %s7 = inlined_call_operand.hbm [shape: f32[4,8,128], index: 7, kind: output, shape index: {1}]
  %8 = xla_tuple %s6, %s7
  %s9 = sld [smem:[#allocation0]]
  $region46: #{residual_phi_forward.1} parent=0
    _
  %s11 = ssub.s32 1, %s9
  %s12 = scalar_select 0, %s11, %s9
  $region1: #{residual_phi_forward.1} parent=0
    #allocation2 [shape = 'u8[4096]{0}', space=vmem, size = 0x1000, scoped, tag = 'input window, operand 0, single buffered']
    #allocation3 [shape = 's32[1]{0}', space=sflag, size = 0x4, scoped, tag = 'scoped memory for residual_phi_forward.1']
    #allocation4 [shape = 's32[1]{0}', space=sflag, size = 0x4, scoped, tag = 'scoped memory for residual_phi_forward.1']
    #allocation5 [shape = 'u8[4096]{0}', space=vmem, size = 0x1000, scoped, tag = 'output window, operand 0, single buffered']
    #allocation6 [shape = 'u8[16384]{0}', space=vmem, size = 0x4000, scoped, tag = 'output window, operand 1, single buffered']
    #allocation7 [shape = 's32[1]{0}', space=sflag, size = 0x4, scoped, tag = 'scoped memory for residual_phi_forward.1']
    %13 = vsyncpa [#allocation3], 0
    %14 = vsyncpa [#allocation4], 0
    %15 = vsyncpa [#allocation7], 0
    // Predicated region
    $region2: #{residual_phi_forward.1} parent=1 // pred_check
      _
    $region3: #{residual_phi_forward.1} parent=1 // pred_check_branch
      %17 = sbr.rel (0) target = $region5
    $region4: #{residual_phi_forward.1} parent=1 // pred_region
      %s19 = ssub.s32 128, 128
      %20 = vsyncadd [#allocation3], %s19
      %s22 = sshll.u32 [#allocation2], 4
      %s23 = int_to_ptr.vmem [resolvable:$true] %s22
      %25 = dma.hbm_to_vmem [thread:$0]  %s0, 128, %s23, [#allocation3]
    $region5: #{residual_phi_forward.1} parent=1 // pred_fallthru
      _
    // Predicated region
    $region6: #{residual_phi_forward.1} parent=1 // pred_check
      _
    $region7: #{residual_phi_forward.1} parent=1 // pred_check_branch
      %27 = sbr.rel (0) target = $region9
    $region8: #{residual_phi_forward.1} parent=1 // pred_region
      _
    $region9: #{residual_phi_forward.1} parent=1 // pred_fallthru
      _
    // Predicated region
    $region10: #{residual_phi_forward.1} parent=1 // pred_check
      _
    $region11: #{residual_phi_forward.1} parent=1 // pred_check_branch
      %29 = sbr.rel (0) target = $region13
    $region12: #{residual_phi_forward.1} parent=1 // pred_region
      _
    $region13: #{residual_phi_forward.1} parent=1 // pred_fallthru
      _
    // Predicated region
    $region14: #{residual_phi_forward.1} parent=1 // pred_check
      _
    $region15: #{residual_phi_forward.1} parent=1 // pred_check_branch
      %31 = sbr.rel (0) target = $region17
    $region16: #{residual_phi_forward.1} parent=1 // pred_region
      _
    $region17: #{residual_phi_forward.1} parent=1 // pred_fallthru
      _
    // Predicated region
    $region18: #{residual_phi_forward.1} parent=1 // pred_check
      _
    $region19: #{residual_phi_forward.1} parent=1 // pred_check_branch
      %33 = sbr.rel (0) target = $region21
    $region20: #{residual_phi_forward.1} parent=1 // pred_region
      _
    $region21: #{residual_phi_forward.1} parent=1 // pred_fallthru
      _
    // Predicated region
    $region22: #{residual_phi_forward.1} parent=1 // pred_check
      _
    $region23: #{residual_phi_forward.1} parent=1 // pred_check_branch
      %35 = sbr.rel (0) target = $region25
    $region24: #{residual_phi_forward.1} parent=1 // pred_region
      _
    $region25: #{residual_phi_forward.1} parent=1 // pred_fallthru
      _
    // Predicated region
    $region26: #{residual_phi_forward.1} parent=1 // pred_check
      _
    $region27: #{residual_phi_forward.1} parent=1 // pred_check_branch
      %37 = sbr.rel (0) target = $region29
    $region28: #{residual_phi_forward.1} parent=1 // pred_region
      %38 = dma.done [#allocation3], 128
    $region29: #{residual_phi_forward.1} parent=1 // pred_fallthru
      _
    %v40 = vld [vmem:[#allocation2] sm:$0xff]
    %41 = vst [vmem:[#allocation5] sm:$0xff] %v40
    %v42 = vld [vmem:[#allocation5] sm:$0xff]
    %v43 = vld [vmem:[%s1] sm:$0xf]
    %v44 = vld [vmem:[%s1 + $0x4] sm:$0xf]
    %v45 = vld [vmem:[%s1 + $0x8] sm:$0xf]
    %v46 = vld [vmem:[%s1 + $0xc] sm:$0xf]
    %v47 = vld [vmem:[%s1 + $0x10] sm:$0xf]
    %v48 = vld [vmem:[%s1 + $0x14] sm:$0xf]
    %v49 = vld [vmem:[%s1 + $0x18] sm:$0xf]
    %v50 = vld [vmem:[%s1 + $0x1c] sm:$0xf]
    %v51 = vld [vmem:[%s1 + $0x20] sm:$0xf]
    %v52 = vld [vmem:[%s1 + $0x24] sm:$0xf]
    %v53 = vld [vmem:[%s1 + $0x28] sm:$0xf]
    %v54 = vld [vmem:[%s1 + $0x2c] sm:$0xf]
    %v55 = vld [vmem:[%s1 + $0x30] sm:$0xf]
    %v56 = vld [vmem:[%s1 + $0x34] sm:$0xf]
    %v57 = vld [vmem:[%s1 + $0x38] sm:$0xf]
    %v58 = vld [vmem:[%s1 + $0x3c] sm:$0xf]
    %v59 = vld [vmem:[%s2] sm:$0x1]
    %v60 = vld [vmem:[%s3] sm:$0x1]
    %v61 = vld [vmem:[%s4] sm:$0xf]
    %v62 = vld [vmem:[%s4 + $0x4] sm:$0xf]
    %v63 = vld [vmem:[%s4 + $0x8] sm:$0xf]
    %v64 = vld [vmem:[%s4 + $0xc] sm:$0xf]
    %v65 = vld [vmem:[%s4 + $0x10] sm:$0xf]
    %v66 = vld [vmem:[%s4 + $0x14] sm:$0xf]
    %v67 = vld [vmem:[%s4 + $0x18] sm:$0xf]
    %v68 = vld [vmem:[%s4 + $0x1c] sm:$0xf]
    %v69 = vld [vmem:[%s4 + $0x20] sm:$0xf]
    %v70 = vld [vmem:[%s4 + $0x24] sm:$0xf]
    %v71 = vld [vmem:[%s4 + $0x28] sm:$0xf]
    %v72 = vld [vmem:[%s4 + $0x2c] sm:$0xf]
    %v73 = vld [vmem:[%s4 + $0x30] sm:$0xf]
    %v74 = vld [vmem:[%s4 + $0x34] sm:$0xf]
    %v75 = vld [vmem:[%s4 + $0x38] sm:$0xf]
    %v76 = vld [vmem:[%s4 + $0x3c] sm:$0xf]
    %v77 = vld [vmem:[%s5] sm:$0x1]
    %v78 = vpack.c.bf16 %v42, %v42
    %v95 = vunpack.c.l.b16 %v43
    %v96 = vunpack.c.l.b16 %v44
    %v97 = vunpack.c.l.b16 %v45
    %v98 = vunpack.c.l.b16 %v46
    %v99 = vunpack.c.l.b16 %v47
    %v100 = vunpack.c.l.b16 %v48
    %v101 = vunpack.c.l.b16 %v49
    %v102 = vunpack.c.l.b16 %v50
    %v103 = vunpack.c.l.b16 %v51
    %v104 = vunpack.c.l.b16 %v52
    %v105 = vunpack.c.l.b16 %v53
    %v106 = vunpack.c.l.b16 %v54
    %v107 = vunpack.c.l.b16 %v55
    %v108 = vunpack.c.l.b16 %v56
    %v109 = vunpack.c.l.b16 %v57
    %v110 = vunpack.c.l.b16 %v58
    %v111 = vpack.c.b16 %v96, %v95
    %v112 = vpack.c.b16 %v98, %v97
    %v113 = vpack.c.b16 %v100, %v99
    %v114 = vpack.c.b16 %v102, %v101
    %v115 = vpack.c.b16 %v104, %v103
    %v116 = vpack.c.b16 %v106, %v105
    %v117 = vpack.c.b16 %v108, %v107
    %v118 = vpack.c.b16 %v110, %v109
    %127 = vmatprep.subr.bf16.mxu0 0
    %128 = vmatpush1.bf16.msra.mxu0 %v118
    %129 = vmatprep.subr.bf16.mxu0 0
    %130 = vmatpush1.bf16.msra.mxu0 %v117
    %131 = vmatprep.subr.bf16.mxu0 0
    %132 = vmatpush1.bf16.msra.mxu0 %v116
    %133 = vmatprep.subr.bf16.mxu0 0
    %134 = vmatpush1.bf16.msra.mxu0 %v115
    %135 = vmatprep.subr.bf16.mxu0 0
    %136 = vmatpush1.bf16.msra.mxu0 %v114
    %137 = vmatprep.subr.bf16.mxu0 0
    %138 = vmatpush1.bf16.msra.mxu0 %v113
    %139 = vmatprep.subr.bf16.mxu0 0
    %140 = vmatpush1.bf16.msra.mxu0 %v112
    %141 = vmatprep.subr.bf16.mxu0 0
    %142 = vmatpush1.bf16.msra.mxu0 %v111
    %143 = vmatprep.subr.bf16.mxu0 0
    %144 = vmatpush2.bf16.msra.mxu0 0
    %145 = vmatprep.subr.bf16.mxu0 0
    %146 = vmatpush2.bf16.msra.mxu0 0
    %147 = vmatprep.subr.bf16.mxu0 0
    %148 = vmatpush2.bf16.msra.mxu0 0
    %149 = vmatprep.subr.bf16.mxu0 0
    %150 = vmatpush2.bf16.msra.mxu0 0
    %151 = vmatprep.subr.bf16.mxu0 0
    %152 = vmatpush2.bf16.msra.mxu0 0
    %153 = vmatprep.subr.bf16.mxu0 0
    %154 = vmatpush2.bf16.msra.mxu0 0
    %155 = vmatprep.subr.bf16.mxu0 0
    %156 = vmatpush2.bf16.msra.mxu0 0
    %157 = vmatprep.subr.bf16.mxu0 0
    %158 = vmatpush2.bf16.msra.mxu0 0
    %159 = vmatprep.mubr.bf16.mxu0 0
    %160 = vmatmul.mubr.bf16.gmra.mxu0 %v78
    %v161 = vpop.f32.mrf.mxu0
    %v162 = vadd.f32 0.0, %v161
    %v163 = vpop.f32.mrf.mxu0
    %v164 = vpop.f32.mrf.mxu0
    %v165 = vpop.f32.mrf.mxu0
    %166 = vdwg.mxu0
    %v167 = vrot.slane %v162, 4
    %v168 = vadd.f32 %v162, %v167
    %v169 = vrot.slane %v168, 2
    %v170 = vadd.f32 %v168, %v169
    %v171 = vrot.slane %v170, 1
    %v172 = vadd.f32 %v170, %v171
    %v173 = vmul.f32 %v172, 0.125
    %v174 = vmul.f32 %v162, %v162
    %v175 = vrot.slane %v174, 4
    %v176 = vadd.f32 %v174, %v175
    %v177 = vrot.slane %v176, 2
    %v178 = vadd.f32 %v176, %v177
    %v179 = vrot.slane %v178, 1
    %v180 = vadd.f32 %v178, %v179
    %v181 = vmul.f32 %v180, 0.125
    %v182 = vmul.f32 %v173, %v173
    %v183 = vsub.f32 %v181, %v182
    %v184 = vmax.f32 %v183, 0.0
    %v185 = vadd.f32 %v184, 1e-05
    %v186 = vrsqrt.pop %v185
    %v187 = vmul.f32 %v59, %v186
    %v188 = vmul.f32 %v173, %v187
    %v189 = vsub.f32 %v60, %v188
    %v191 = vlaneseq
    %v192 = vshrl.u32 %v191, 7
    %v193 = vsub.s32 0, %v192
    %v194 = vrot.slane %v187, %v193
    %v196 = vmul.f32 %v162, %v194
    %v198 = vlaneseq
    %v199 = vshrl.u32 %v198, 7
    %v200 = vsub.s32 0, %v199
    %v201 = vrot.slane %v189, %v200
    %v203 = vadd.f32 %v196, %v201
    %v204 = vmax.f32 %v203, 0.0
    %v205 = vpack.c.bf16 %v204, %v204
    %v207 = vlaneseq
    %v208 = vshrl.u32 %v207, 7
    %v209 = vsub.s32 0, %v208
    %v210 = vrot.slane %v77, %v209
    %v228 = vunpack.c.l.b16 %v61
    %v229 = vunpack.c.l.b16 %v62
    %v230 = vunpack.c.l.b16 %v63
    %v231 = vunpack.c.l.b16 %v64
    %v232 = vunpack.c.l.b16 %v65
    %v233 = vunpack.c.l.b16 %v66
    %v234 = vunpack.c.l.b16 %v67
    %v235 = vunpack.c.l.b16 %v68
    %v236 = vunpack.c.l.b16 %v69
    %v237 = vunpack.c.l.b16 %v70
    %v238 = vunpack.c.l.b16 %v71
    %v239 = vunpack.c.l.b16 %v72
    %v240 = vunpack.c.l.b16 %v73
    %v241 = vunpack.c.l.b16 %v74
    %v242 = vunpack.c.l.b16 %v75
    %v243 = vunpack.c.l.b16 %v76
    %v244 = vpack.c.b16 %v229, %v228
    %v245 = vpack.c.b16 %v231, %v230
    %v246 = vpack.c.b16 %v233, %v232
    %v247 = vpack.c.b16 %v235, %v234
    %v248 = vpack.c.b16 %v237, %v236
    %v249 = vpack.c.b16 %v239, %v238
    %v250 = vpack.c.b16 %v241, %v240
    %v251 = vpack.c.b16 %v243, %v242
    %260 = vmatprep.subr.bf16.mxu0 0
    %261 = vmatpush1.bf16.msra.mxu0 %v251
    %262 = vmatprep.subr.bf16.mxu0 0
    %263 = vmatpush1.bf16.msra.mxu0 %v250
    %264 = vmatprep.subr.bf16.mxu0 0
    %265 = vmatpush1.bf16.msra.mxu0 %v249
    %266 = vmatprep.subr.bf16.mxu0 0
    %267 = vmatpush1.bf16.msra.mxu0 %v248
    %268 = vmatprep.subr.bf16.mxu0 0
    %269 = vmatpush1.bf16.msra.mxu0 %v247
    %270 = vmatprep.subr.bf16.mxu0 0
    %271 = vmatpush1.bf16.msra.mxu0 %v246
    %272 = vmatprep.subr.bf16.mxu0 0
    %273 = vmatpush1.bf16.msra.mxu0 %v245
    %274 = vmatprep.subr.bf16.mxu0 0
    %275 = vmatpush1.bf16.msra.mxu0 %v244
    %276 = vmatprep.subr.bf16.mxu0 0
    %277 = vmatpush2.bf16.msra.mxu0 0
    %278 = vmatprep.subr.bf16.mxu0 0
    %279 = vmatpush2.bf16.msra.mxu0 0
    %280 = vmatprep.subr.bf16.mxu0 0
    %281 = vmatpush2.bf16.msra.mxu0 0
    %282 = vmatprep.subr.bf16.mxu0 0
    %283 = vmatpush2.bf16.msra.mxu0 0
    %284 = vmatprep.subr.bf16.mxu0 0
    %285 = vmatpush2.bf16.msra.mxu0 0
    %286 = vmatprep.subr.bf16.mxu0 0
    %287 = vmatpush2.bf16.msra.mxu0 0
    %288 = vmatprep.subr.bf16.mxu0 0
    %289 = vmatpush2.bf16.msra.mxu0 0
    %290 = vmatprep.subr.bf16.mxu0 0
    %291 = vmatpush2.bf16.msra.mxu0 0
    %292 = vmatprep.mubr.bf16.mxu0 0
    %293 = vmatmul.mubr.bf16.gmra.mxu0 %v205
    %v294 = vpop.f32.mrf.mxu0
    %v295 = vadd.f32 %v210, %v294
    %v296 = vpop.f32.mrf.mxu0
    %v297 = vpop.f32.mrf.mxu0
    %v298 = vpop.f32.mrf.mxu0
    %299 = vdwg.mxu0
    %v300 = vadd.f32 %v42, %v295
    %301 = vst [vmem:[#allocation5] sm:$0xff] %v300
    %302 = vst [vmem:[#allocation6] sm:$0xff] %v295
    %v303 = vld [vmem:[#allocation5] sm:$0xff]
    %s304 = scalar_lea.vmem %s1, 64
    %v305 = vld [vmem:[%s304] sm:$0xf]
    %v306 = vld [vmem:[%s304 + $0x4] sm:$0xf]
    %v307 = vld [vmem:[%s304 + $0x8] sm:$0xf]
    %v308 = vld [vmem:[%s304 + $0xc] sm:$0xf]
    %v309 = vld [vmem:[%s304 + $0x10] sm:$0xf]
    %v310 = vld [vmem:[%s304 + $0x14] sm:$0xf]
    %v311 = vld [vmem:[%s304 + $0x18] sm:$0xf]
    %v312 = vld [vmem:[%s304 + $0x1c] sm:$0xf]
    %v313 = vld [vmem:[%s304 + $0x20] sm:$0xf]
    %v314 = vld [vmem:[%s304 + $0x24] sm:$0xf]
    %v315 = vld [vmem:[%s304 + $0x28] sm:$0xf]
    %v316 = vld [vmem:[%s304 + $0x2c] sm:$0xf]
    %v317 = vld [vmem:[%s304 + $0x30] sm:$0xf]
    %v318 = vld [vmem:[%s304 + $0x34] sm:$0xf]
    %v319 = vld [vmem:[%s304 + $0x38] sm:$0xf]
    %v320 = vld [vmem:[%s304 + $0x3c] sm:$0xf]
    %s321 = scalar_lea.vmem %s2, 1
    %v322 = vld [vmem:[%s321] sm:$0x1]
    %s323 = scalar_lea.vmem %s3, 1
    %v324 = vld [vmem:[%s323] sm:$0x1]
    %s325 = scalar_lea.vmem %s4, 64
    %v326 = vld [vmem:[%s325] sm:$0xf]
    %v327 = vld [vmem:[%s325 + $0x4] sm:$0xf]
    %v328 = vld [vmem:[%s325 + $0x8] sm:$0xf]
    %v329 = vld [vmem:[%s325 + $0xc] sm:$0xf]
    %v330 = vld [vmem:[%s325 + $0x10] sm:$0xf]
    %v331 = vld [vmem:[%s325 + $0x14] sm:$0xf]
    %v332 = vld [vmem:[%s325 + $0x18] sm:$0xf]
    %v333 = vld [vmem:[%s325 + $0x1c] sm:$0xf]
    %v334 = vld [vmem:[%s325 + $0x20] sm:$0xf]
    %v335 = vld [vmem:[%s325 + $0x24] sm:$0xf]
    %v336 = vld [vmem:[%s325 + $0x28] sm:$0xf]
    %v337 = vld [vmem:[%s325 + $0x2c] sm:$0xf]
    %v338 = vld [vmem:[%s325 + $0x30] sm:$0xf]
    %v339 = vld [vmem:[%s325 + $0x34] sm:$0xf]
    %v340 = vld [vmem:[%s325 + $0x38] sm:$0xf]
    %v341 = vld [vmem:[%s325 + $0x3c] sm:$0xf]
    %s342 = scalar_lea.vmem %s5, 1
    %v343 = vld [vmem:[%s342] sm:$0x1]
    %v344 = vpack.c.bf16 %v303, %v303
    %v361 = vunpack.c.l.b16 %v305
    %v362 = vunpack.c.l.b16 %v306
    %v363 = vunpack.c.l.b16 %v307
    %v364 = vunpack.c.l.b16 %v308
    %v365 = vunpack.c.l.b16 %v309
    %v366 = vunpack.c.l.b16 %v310
    %v367 = vunpack.c.l.b16 %v311
    %v368 = vunpack.c.l.b16 %v312
    %v369 = vunpack.c.l.b16 %v313
    %v370 = vunpack.c.l.b16 %v314
    %v371 = vunpack.c.l.b16 %v315
    %v372 = vunpack.c.l.b16 %v316
    %v373 = vunpack.c.l.b16 %v317
    %v374 = vunpack.c.l.b16 %v318
    %v375 = vunpack.c.l.b16 %v319
    %v376 = vunpack.c.l.b16 %v320
    %v377 = vpack.c.b16 %v362, %v361
    %v378 = vpack.c.b16 %v364, %v363
    %v379 = vpack.c.b16 %v366, %v365
    %v380 = vpack.c.b16 %v368, %v367
    %v381 = vpack.c.b16 %v370, %v369
    %v382 = vpack.c.b16 %v372, %v371
    %v383 = vpack.c.b16 %v374, %v373
    %v384 = vpack.c.b16 %v376, %v375
    %393 = vmatprep.subr.bf16.mxu0 0
    %394 = vmatpush1.bf16.msra.mxu0 %v384
    %395 = vmatprep.subr.bf16.mxu0 0
    %396 = vmatpush1.bf16.msra.mxu0 %v383
    %397 = vmatprep.subr.bf16.mxu0 0
    %398 = vmatpush1.bf16.msra.mxu0 %v382
    %399 = vmatprep.subr.bf16.mxu0 0
    %400 = vmatpush1.bf16.msra.mxu0 %v381
    %401 = vmatprep.subr.bf16.mxu0 0
    %402 = vmatpush1.bf16.msra.mxu0 %v380
    %403 = vmatprep.subr.bf16.mxu0 0
    %404 = vmatpush1.bf16.msra.mxu0 %v379
    %405 = vmatprep.subr.bf16.mxu0 0
    %406 = vmatpush1.bf16.msra.mxu0 %v378
    %407 = vmatprep.subr.bf16.mxu0 0
    %408 = vmatpush1.bf16.msra.mxu0 %v377
    %409 = vmatprep.subr.bf16.mxu0 0
    %410 = vmatpush2.bf16.msra.mxu0 0
    %411 = vmatprep.subr.bf16.mxu0 0
    %412 = vmatpush2.bf16.msra.mxu0 0
    %413 = vmatprep.subr.bf16.mxu0 0
    %414 = vmatpush2.bf16.msra.mxu0 0
    %415 = vmatprep.subr.bf16.mxu0 0
    %416 = vmatpush2.bf16.msra.mxu0 0
    %417 = vmatprep.subr.bf16.mxu0 0
    %418 = vmatpush2.bf16.msra.mxu0 0
    %419 = vmatprep.subr.bf16.mxu0 0
    %420 = vmatpush2.bf16.msra.mxu0 0
    %421 = vmatprep.subr.bf16.mxu0 0
    %422 = vmatpush2.bf16.msra.mxu0 0
    %423 = vmatprep.subr.bf16.mxu0 0
    %424 = vmatpush2.bf16.msra.mxu0 0
    %425 = vmatprep.mubr.bf16.mxu0 0
    %426 = vmatmul.mubr.bf16.gmra.mxu0 %v344
    %v427 = vpop.f32.mrf.mxu0
    %v428 = vadd.f32 0.0, %v427
    %v429 = vpop.f32.mrf.mxu0
    %v430 = vpop.f32.mrf.mxu0
    %v431 = vpop.f32.mrf.mxu0
    %432 = vdwg.mxu0
    %v433 = vrot.slane %v428, 4
    %v434 = vadd.f32 %v428, %v433
    %v435 = vrot.slane %v434, 2
    %v436 = vadd.f32 %v434, %v435
    %v437 = vrot.slane %v436, 1
    %v438 = vadd.f32 %v436, %v437
    %v439 = vmul.f32 %v438, 0.125
    %v440 = vmul.f32 %v428, %v428
    %v441 = vrot.slane %v440, 4
    %v442 = vadd.f32 %v440, %v441
    %v443 = vrot.slane %v442, 2
    %v444 = vadd.f32 %v442, %v443
    %v445 = vrot.slane %v444, 1
    %v446 = vadd.f32 %v444, %v445
    %v447 = vmul.f32 %v446, 0.125
    %v448 = vmul.f32 %v439, %v439
    %v449 = vsub.f32 %v447, %v448
    %v450 = vmax.f32 %v449, 0.0
    %v451 = vadd.f32 %v450, 1e-05
    %v452 = vrsqrt.pop %v451
    %v453 = vmul.f32 %v322, %v452
    %v454 = vmul.f32 %v439, %v453
    %v455 = vsub.f32 %v324, %v454
    %v457 = vlaneseq
    %v458 = vshrl.u32 %v457, 7
    %v459 = vsub.s32 0, %v458
    %v460 = vrot.slane %v453, %v459
    %v462 = vmul.f32 %v428, %v460
    %v464 = vlaneseq
    %v465 = vshrl.u32 %v464, 7
    %v466 = vsub.s32 0, %v465
    %v467 = vrot.slane %v455, %v466
    %v469 = vadd.f32 %v462, %v467
    %v470 = vmax.f32 %v469, 0.0
    %v471 = vpack.c.bf16 %v470, %v470
    %v473 = vlaneseq
    %v474 = vshrl.u32 %v473, 7
    %v475 = vsub.s32 0, %v474
    %v476 = vrot.slane %v343, %v475
    %v494 = vunpack.c.l.b16 %v326
    %v495 = vunpack.c.l.b16 %v327
    %v496 = vunpack.c.l.b16 %v328
    %v497 = vunpack.c.l.b16 %v329
    %v498 = vunpack.c.l.b16 %v330
    %v499 = vunpack.c.l.b16 %v331
    %v500 = vunpack.c.l.b16 %v332
    %v501 = vunpack.c.l.b16 %v333
    %v502 = vunpack.c.l.b16 %v334
    %v503 = vunpack.c.l.b16 %v335
    %v504 = vunpack.c.l.b16 %v336
    %v505 = vunpack.c.l.b16 %v337
    %v506 = vunpack.c.l.b16 %v338
    %v507 = vunpack.c.l.b16 %v339
    %v508 = vunpack.c.l.b16 %v340
    %v509 = vunpack.c.l.b16 %v341
    %v510 = vpack.c.b16 %v495, %v494
    %v511 = vpack.c.b16 %v497, %v496
    %v512 = vpack.c.b16 %v499, %v498
    %v513 = vpack.c.b16 %v501, %v500
    %v514 = vpack.c.b16 %v503, %v502
    %v515 = vpack.c.b16 %v505, %v504
    %v516 = vpack.c.b16 %v507, %v506
    %v517 = vpack.c.b16 %v509, %v508
    %526 = vmatprep.subr.bf16.mxu0 0
    %527 = vmatpush1.bf16.msra.mxu0 %v517
    %528 = vmatprep.subr.bf16.mxu0 0
    %529 = vmatpush1.bf16.msra.mxu0 %v516
    %530 = vmatprep.subr.bf16.mxu0 0
    %531 = vmatpush1.bf16.msra.mxu0 %v515
    %532 = vmatprep.subr.bf16.mxu0 0
    %533 = vmatpush1.bf16.msra.mxu0 %v514
    %534 = vmatprep.subr.bf16.mxu0 0
    %535 = vmatpush1.bf16.msra.mxu0 %v513
    %536 = vmatprep.subr.bf16.mxu0 0
    %537 = vmatpush1.bf16.msra.mxu0 %v512
    %538 = vmatprep.subr.bf16.mxu0 0
    %539 = vmatpush1.bf16.msra.mxu0 %v511
    %540 = vmatprep.subr.bf16.mxu0 0
    %541 = vmatpush1.bf16.msra.mxu0 %v510
    %542 = vmatprep.subr.bf16.mxu0 0
    %543 = vmatpush2.bf16.msra.mxu0 0
    %544 = vmatprep.subr.bf16.mxu0 0
    %545 = vmatpush2.bf16.msra.mxu0 0
    %546 = vmatprep.subr.bf16.mxu0 0
    %547 = vmatpush2.bf16.msra.mxu0 0
    %548 = vmatprep.subr.bf16.mxu0 0
    %549 = vmatpush2.bf16.msra.mxu0 0
    %550 = vmatprep.subr.bf16.mxu0 0
    %551 = vmatpush2.bf16.msra.mxu0 0
    %552 = vmatprep.subr.bf16.mxu0 0
    %553 = vmatpush2.bf16.msra.mxu0 0
    %554 = vmatprep.subr.bf16.mxu0 0
    %555 = vmatpush2.bf16.msra.mxu0 0
    %556 = vmatprep.subr.bf16.mxu0 0
    %557 = vmatpush2.bf16.msra.mxu0 0
    %558 = vmatprep.mubr.bf16.mxu0 0
    %559 = vmatmul.mubr.bf16.gmra.mxu0 %v471
    %v560 = vpop.f32.mrf.mxu0
    %v561 = vadd.f32 %v476, %v560
    %v562 = vpop.f32.mrf.mxu0
    %v563 = vpop.f32.mrf.mxu0
    %v564 = vpop.f32.mrf.mxu0
    %565 = vdwg.mxu0
    %v566 = vadd.f32 %v303, %v561
    %567 = vst [vmem:[#allocation5] sm:$0xff] %v566
    %s568 = scalar_lea.vmem [#allocation6], 8
    %569 = vst [vmem:[%s568] sm:$0xff] %v561
    %v570 = vld [vmem:[#allocation5] sm:$0xff]
    %s571 = scalar_lea.vmem %s1, 128
    %v572 = vld [vmem:[%s571] sm:$0xf]
    %v573 = vld [vmem:[%s571 + $0x4] sm:$0xf]
    %v574 = vld [vmem:[%s571 + $0x8] sm:$0xf]
    %v575 = vld [vmem:[%s571 + $0xc] sm:$0xf]
    %v576 = vld [vmem:[%s571 + $0x10] sm:$0xf]
    %v577 = vld [vmem:[%s571 + $0x14] sm:$0xf]
    %v578 = vld [vmem:[%s571 + $0x18] sm:$0xf]
    %v579 = vld [vmem:[%s571 + $0x1c] sm:$0xf]
    %v580 = vld [vmem:[%s571 + $0x20] sm:$0xf]
    %v581 = vld [vmem:[%s571 + $0x24] sm:$0xf]
    %v582 = vld [vmem:[%s571 + $0x28] sm:$0xf]
    %v583 = vld [vmem:[%s571 + $0x2c] sm:$0xf]
    %v584 = vld [vmem:[%s571 + $0x30] sm:$0xf]
    %v585 = vld [vmem:[%s571 + $0x34] sm:$0xf]
    %v586 = vld [vmem:[%s571 + $0x38] sm:$0xf]
    %v587 = vld [vmem:[%s571 + $0x3c] sm:$0xf]
    %s588 = scalar_lea.vmem %s2, 2
    %v589 = vld [vmem:[%s588] sm:$0x1]
    %s590 = scalar_lea.vmem %s3, 2
    %v591 = vld [vmem:[%s590] sm:$0x1]
    %s592 = scalar_lea.vmem %s4, 128
    %v593 = vld [vmem:[%s592] sm:$0xf]
    %v594 = vld [vmem:[%s592 + $0x4] sm:$0xf]
    %v595 = vld [vmem:[%s592 + $0x8] sm:$0xf]
    %v596 = vld [vmem:[%s592 + $0xc] sm:$0xf]
    %v597 = vld [vmem:[%s592 + $0x10] sm:$0xf]
    %v598 = vld [vmem:[%s592 + $0x14] sm:$0xf]
    %v599 = vld [vmem:[%s592 + $0x18] sm:$0xf]
    %v600 = vld [vmem:[%s592 + $0x1c] sm:$0xf]
    %v601 = vld [vmem:[%s592 + $0x20] sm:$0xf]
    %v602 = vld [vmem:[%s592 + $0x24] sm:$0xf]
    %v603 = vld [vmem:[%s592 + $0x28] sm:$0xf]
    %v604 = vld [vmem:[%s592 + $0x2c] sm:$0xf]
    %v605 = vld [vmem:[%s592 + $0x30] sm:$0xf]
    %v606 = vld [vmem:[%s592 + $0x34] sm:$0xf]
    %v607 = vld [vmem:[%s592 + $0x38] sm:$0xf]
    %v608 = vld [vmem:[%s592 + $0x3c] sm:$0xf]
    %s609 = scalar_lea.vmem %s5, 2
    %v610 = vld [vmem:[%s609] sm:$0x1]
    %v611 = vpack.c.bf16 %v570, %v570
    %v628 = vunpack.c.l.b16 %v572
    %v629 = vunpack.c.l.b16 %v573
    %v630 = vunpack.c.l.b16 %v574
    %v631 = vunpack.c.l.b16 %v575
    %v632 = vunpack.c.l.b16 %v576
    %v633 = vunpack.c.l.b16 %v577
    %v634 = vunpack.c.l.b16 %v578
    %v635 = vunpack.c.l.b16 %v579
    %v636 = vunpack.c.l.b16 %v580
    %v637 = vunpack.c.l.b16 %v581
    %v638 = vunpack.c.l.b16 %v582
    %v639 = vunpack.c.l.b16 %v583
    %v640 = vunpack.c.l.b16 %v584
    %v641 = vunpack.c.l.b16 %v585
    %v642 = vunpack.c.l.b16 %v586
    %v643 = vunpack.c.l.b16 %v587
    %v644 = vpack.c.b16 %v629, %v628
    %v645 = vpack.c.b16 %v631, %v630
    %v646 = vpack.c.b16 %v633, %v632
    %v647 = vpack.c.b16 %v635, %v634
    %v648 = vpack.c.b16 %v637, %v636
    %v649 = vpack.c.b16 %v639, %v638
    %v650 = vpack.c.b16 %v641, %v640
    %v651 = vpack.c.b16 %v643, %v642
    %660 = vmatprep.subr.bf16.mxu0 0
    %661 = vmatpush1.bf16.msra.mxu0 %v651
    %662 = vmatprep.subr.bf16.mxu0 0
    %663 = vmatpush1.bf16.msra.mxu0 %v650
    %664 = vmatprep.subr.bf16.mxu0 0
    %665 = vmatpush1.bf16.msra.mxu0 %v649
    %666 = vmatprep.subr.bf16.mxu0 0
    %667 = vmatpush1.bf16.msra.mxu0 %v648
    %668 = vmatprep.subr.bf16.mxu0 0
    %669 = vmatpush1.bf16.msra.mxu0 %v647
    %670 = vmatprep.subr.bf16.mxu0 0
    %671 = vmatpush1.bf16.msra.mxu0 %v646
    %672 = vmatprep.subr.bf16.mxu0 0
    %673 = vmatpush1.bf16.msra.mxu0 %v645
    %674 = vmatprep.subr.bf16.mxu0 0
    %675 = vmatpush1.bf16.msra.mxu0 %v644
    %676 = vmatprep.subr.bf16.mxu0 0
    %677 = vmatpush2.bf16.msra.mxu0 0
    %678 = vmatprep.subr.bf16.mxu0 0
    %679 = vmatpush2.bf16.msra.mxu0 0
    %680 = vmatprep.subr.bf16.mxu0 0
    %681 = vmatpush2.bf16.msra.mxu0 0
    %682 = vmatprep.subr.bf16.mxu0 0
    %683 = vmatpush2.bf16.msra.mxu0 0
    %684 = vmatprep.subr.bf16.mxu0 0
    %685 = vmatpush2.bf16.msra.mxu0 0
    %686 = vmatprep.subr.bf16.mxu0 0
    %687 = vmatpush2.bf16.msra.mxu0 0
    %688 = vmatprep.subr.bf16.mxu0 0
    %689 = vmatpush2.bf16.msra.mxu0 0
    %690 = vmatprep.subr.bf16.mxu0 0
    %691 = vmatpush2.bf16.msra.mxu0 0
    %692 = vmatprep.mubr.bf16.mxu0 0
    %693 = vmatmul.mubr.bf16.gmra.mxu0 %v611
    %v694 = vpop.f32.mrf.mxu0
    %v695 = vadd.f32 0.0, %v694
    %v696 = vpop.f32.mrf.mxu0
    %v697 = vpop.f32.mrf.mxu0
    %v698 = vpop.f32.mrf.mxu0
    %699 = vdwg.mxu0
    %v700 = vrot.slane %v695, 4
    %v701 = vadd.f32 %v695, %v700
    %v702 = vrot.slane %v701, 2
    %v703 = vadd.f32 %v701, %v702
    %v704 = vrot.slane %v703, 1
    %v705 = vadd.f32 %v703, %v704
    %v706 = vmul.f32 %v705, 0.125
    %v707 = vmul.f32 %v695, %v695
    %v708 = vrot.slane %v707, 4
    %v709 = vadd.f32 %v707, %v708
    %v710 = vrot.slane %v709, 2
    %v711 = vadd.f32 %v709, %v710
    %v712 = vrot.slane %v711, 1
    %v713 = vadd.f32 %v711, %v712
    %v714 = vmul.f32 %v713, 0.125
    %v715 = vmul.f32 %v706, %v706
    %v716 = vsub.f32 %v714, %v715
    %v717 = vmax.f32 %v716, 0.0
    %v718 = vadd.f32 %v717, 1e-05
    %v719 = vrsqrt.pop %v718
    %v720 = vmul.f32 %v589, %v719
    %v721 = vmul.f32 %v706, %v720
    %v722 = vsub.f32 %v591, %v721
    %v724 = vlaneseq
    %v725 = vshrl.u32 %v724, 7
    %v726 = vsub.s32 0, %v725
    %v727 = vrot.slane %v720, %v726
    %v729 = vmul.f32 %v695, %v727
    %v731 = vlaneseq
    %v732 = vshrl.u32 %v731, 7
    %v733 = vsub.s32 0, %v732
    %v734 = vrot.slane %v722, %v733
    %v736 = vadd.f32 %v729, %v734
    %v737 = vmax.f32 %v736, 0.0
    %v738 = vpack.c.bf16 %v737, %v737
    %v740 = vlaneseq
    %v741 = vshrl.u32 %v740, 7
    %v742 = vsub.s32 0, %v741
    %v743 = vrot.slane %v610, %v742
    %v761 = vunpack.c.l.b16 %v593
    %v762 = vunpack.c.l.b16 %v594
    %v763 = vunpack.c.l.b16 %v595
    %v764 = vunpack.c.l.b16 %v596
    %v765 = vunpack.c.l.b16 %v597
    %v766 = vunpack.c.l.b16 %v598
    %v767 = vunpack.c.l.b16 %v599
    %v768 = vunpack.c.l.b16 %v600
    %v769 = vunpack.c.l.b16 %v601
    %v770 = vunpack.c.l.b16 %v602
    %v771 = vunpack.c.l.b16 %v603
    %v772 = vunpack.c.l.b16 %v604
    %v773 = vunpack.c.l.b16 %v605
    %v774 = vunpack.c.l.b16 %v606
    %v775 = vunpack.c.l.b16 %v607
    %v776 = vunpack.c.l.b16 %v608
    %v777 = vpack.c.b16 %v762, %v761
    %v778 = vpack.c.b16 %v764, %v763
    %v779 = vpack.c.b16 %v766, %v765
    %v780 = vpack.c.b16 %v768, %v767
    %v781 = vpack.c.b16 %v770, %v769
    %v782 = vpack.c.b16 %v772, %v771
    %v783 = vpack.c.b16 %v774, %v773
    %v784 = vpack.c.b16 %v776, %v775
    %793 = vmatprep.subr.bf16.mxu0 0
    %794 = vmatpush1.bf16.msra.mxu0 %v784
    %795 = vmatprep.subr.bf16.mxu0 0
    %796 = vmatpush1.bf16.msra.mxu0 %v783
    %797 = vmatprep.subr.bf16.mxu0 0
    %798 = vmatpush1.bf16.msra.mxu0 %v782
    %799 = vmatprep.subr.bf16.mxu0 0
    %800 = vmatpush1.bf16.msra.mxu0 %v781
    %801 = vmatprep.subr.bf16.mxu0 0
    %802 = vmatpush1.bf16.msra.mxu0 %v780
    %803 = vmatprep.subr.bf16.mxu0 0
    %804 = vmatpush1.bf16.msra.mxu0 %v779
    %805 = vmatprep.subr.bf16.mxu0 0
    %806 = vmatpush1.bf16.msra.mxu0 %v778
    %807 = vmatprep.subr.bf16.mxu0 0
    %808 = vmatpush1.bf16.msra.mxu0 %v777
    %809 = vmatprep.subr.bf16.mxu0 0
    %810 = vmatpush2.bf16.msra.mxu0 0
    %811 = vmatprep.subr.bf16.mxu0 0
    %812 = vmatpush2.bf16.msra.mxu0 0
    %813 = vmatprep.subr.bf16.mxu0 0
    %814 = vmatpush2.bf16.msra.mxu0 0
    %815 = vmatprep.subr.bf16.mxu0 0
    %816 = vmatpush2.bf16.msra.mxu0 0
    %817 = vmatprep.subr.bf16.mxu0 0
    %818 = vmatpush2.bf16.msra.mxu0 0
    %819 = vmatprep.subr.bf16.mxu0 0
    %820 = vmatpush2.bf16.msra.mxu0 0
    %821 = vmatprep.subr.bf16.mxu0 0
    %822 = vmatpush2.bf16.msra.mxu0 0
    %823 = vmatprep.subr.bf16.mxu0 0
    %824 = vmatpush2.bf16.msra.mxu0 0
    %825 = vmatprep.mubr.bf16.mxu0 0
    %826 = vmatmul.mubr.bf16.gmra.mxu0 %v738
    %v827 = vpop.f32.mrf.mxu0
    %v828 = vadd.f32 %v743, %v827
    %v829 = vpop.f32.mrf.mxu0
    %v830 = vpop.f32.mrf.mxu0
    %v831 = vpop.f32.mrf.mxu0
    %832 = vdwg.mxu0
    %v833 = vadd.f32 %v570, %v828
    %834 = vst [vmem:[#allocation5] sm:$0xff] %v833
    %s835 = scalar_lea.vmem [#allocation6], 16
    %836 = vst [vmem:[%s835] sm:$0xff] %v828
    %v837 = vld [vmem:[#allocation5] sm:$0xff]
    %s838 = scalar_lea.vmem %s1, 192
    %v839 = vld [vmem:[%s838] sm:$0xf]
    %v840 = vld [vmem:[%s838 + $0x4] sm:$0xf]
    %v841 = vld [vmem:[%s838 + $0x8] sm:$0xf]
    %v842 = vld [vmem:[%s838 + $0xc] sm:$0xf]
    %v843 = vld [vmem:[%s838 + $0x10] sm:$0xf]
    %v844 = vld [vmem:[%s838 + $0x14] sm:$0xf]
    %v845 = vld [vmem:[%s838 + $0x18] sm:$0xf]
    %v846 = vld [vmem:[%s838 + $0x1c] sm:$0xf]
    %v847 = vld [vmem:[%s838 + $0x20] sm:$0xf]
    %v848 = vld [vmem:[%s838 + $0x24] sm:$0xf]
    %v849 = vld [vmem:[%s838 + $0x28] sm:$0xf]
    %v850 = vld [vmem:[%s838 + $0x2c] sm:$0xf]
    %v851 = vld [vmem:[%s838 + $0x30] sm:$0xf]
    %v852 = vld [vmem:[%s838 + $0x34] sm:$0xf]
    %v853 = vld [vmem:[%s838 + $0x38] sm:$0xf]
    %v854 = vld [vmem:[%s838 + $0x3c] sm:$0xf]
    %s855 = scalar_lea.vmem %s2, 3
    %v856 = vld [vmem:[%s855] sm:$0x1]
    %s857 = scalar_lea.vmem %s3, 3
    %v858 = vld [vmem:[%s857] sm:$0x1]
    %s859 = scalar_lea.vmem %s4, 192
    %v860 = vld [vmem:[%s859] sm:$0xf]
    %v861 = vld [vmem:[%s859 + $0x4] sm:$0xf]
    %v862 = vld [vmem:[%s859 + $0x8] sm:$0xf]
    %v863 = vld [vmem:[%s859 + $0xc] sm:$0xf]
    %v864 = vld [vmem:[%s859 + $0x10] sm:$0xf]
    %v865 = vld [vmem:[%s859 + $0x14] sm:$0xf]
    %v866 = vld [vmem:[%s859 + $0x18] sm:$0xf]
    %v867 = vld [vmem:[%s859 + $0x1c] sm:$0xf]
    %v868 = vld [vmem:[%s859 + $0x20] sm:$0xf]
    %v869 = vld [vmem:[%s859 + $0x24] sm:$0xf]
    %v870 = vld [vmem:[%s859 + $0x28] sm:$0xf]
    %v871 = vld [vmem:[%s859 + $0x2c] sm:$0xf]
    %v872 = vld [vmem:[%s859 + $0x30] sm:$0xf]
    %v873 = vld [vmem:[%s859 + $0x34] sm:$0xf]
    %v874 = vld [vmem:[%s859 + $0x38] sm:$0xf]
    %v875 = vld [vmem:[%s859 + $0x3c] sm:$0xf]
    %s876 = scalar_lea.vmem %s5, 3
    %v877 = vld [vmem:[%s876] sm:$0x1]
    %v878 = vpack.c.bf16 %v837, %v837
    %v895 = vunpack.c.l.b16 %v839
    %v896 = vunpack.c.l.b16 %v840
    %v897 = vunpack.c.l.b16 %v841
    %v898 = vunpack.c.l.b16 %v842
    %v899 = vunpack.c.l.b16 %v843
    %v900 = vunpack.c.l.b16 %v844
    %v901 = vunpack.c.l.b16 %v845
    %v902 = vunpack.c.l.b16 %v846
    %v903 = vunpack.c.l.b16 %v847
    %v904 = vunpack.c.l.b16 %v848
    %v905 = vunpack.c.l.b16 %v849
    %v906 = vunpack.c.l.b16 %v850
    %v907 = vunpack.c.l.b16 %v851
    %v908 = vunpack.c.l.b16 %v852
    %v909 = vunpack.c.l.b16 %v853
    %v910 = vunpack.c.l.b16 %v854
    %v911 = vpack.c.b16 %v896, %v895
    %v912 = vpack.c.b16 %v898, %v897
    %v913 = vpack.c.b16 %v900, %v899
    %v914 = vpack.c.b16 %v902, %v901
    %v915 = vpack.c.b16 %v904, %v903
    %v916 = vpack.c.b16 %v906, %v905
    %v917 = vpack.c.b16 %v908, %v907
    %v918 = vpack.c.b16 %v910, %v909
    %927 = vmatprep.subr.bf16.mxu0 0
    %928 = vmatpush1.bf16.msra.mxu0 %v918
    %929 = vmatprep.subr.bf16.mxu0 0
    %930 = vmatpush1.bf16.msra.mxu0 %v917
    %931 = vmatprep.subr.bf16.mxu0 0
    %932 = vmatpush1.bf16.msra.mxu0 %v916
    %933 = vmatprep.subr.bf16.mxu0 0
    %934 = vmatpush1.bf16.msra.mxu0 %v915
    %935 = vmatprep.subr.bf16.mxu0 0
    %936 = vmatpush1.bf16.msra.mxu0 %v914
    %937 = vmatprep.subr.bf16.mxu0 0
    %938 = vmatpush1.bf16.msra.mxu0 %v913
    %939 = vmatprep.subr.bf16.mxu0 0
    %940 = vmatpush1.bf16.msra.mxu0 %v912
    %941 = vmatprep.subr.bf16.mxu0 0
    %942 = vmatpush1.bf16.msra.mxu0 %v911
    %943 = vmatprep.subr.bf16.mxu0 0
    %944 = vmatpush2.bf16.msra.mxu0 0
    %945 = vmatprep.subr.bf16.mxu0 0
    %946 = vmatpush2.bf16.msra.mxu0 0
    %947 = vmatprep.subr.bf16.mxu0 0
    %948 = vmatpush2.bf16.msra.mxu0 0
    %949 = vmatprep.subr.bf16.mxu0 0
    %950 = vmatpush2.bf16.msra.mxu0 0
    %951 = vmatprep.subr.bf16.mxu0 0
    %952 = vmatpush2.bf16.msra.mxu0 0
    %953 = vmatprep.subr.bf16.mxu0 0
    %954 = vmatpush2.bf16.msra.mxu0 0
    %955 = vmatprep.subr.bf16.mxu0 0
    %956 = vmatpush2.bf16.msra.mxu0 0
    %957 = vmatprep.subr.bf16.mxu0 0
    %958 = vmatpush2.bf16.msra.mxu0 0
    %959 = vmatprep.mubr.bf16.mxu0 0
    %960 = vmatmul.mubr.bf16.gmra.mxu0 %v878
    %v961 = vpop.f32.mrf.mxu0
    %v962 = vadd.f32 0.0, %v961
    %v963 = vpop.f32.mrf.mxu0
    %v964 = vpop.f32.mrf.mxu0
    %v965 = vpop.f32.mrf.mxu0
    %966 = vdwg.mxu0
    %v967 = vrot.slane %v962, 4
    %v968 = vadd.f32 %v962, %v967
    %v969 = vrot.slane %v968, 2
    %v970 = vadd.f32 %v968, %v969
    %v971 = vrot.slane %v970, 1
    %v972 = vadd.f32 %v970, %v971
    %v973 = vmul.f32 %v972, 0.125
    %v974 = vmul.f32 %v962, %v962
    %v975 = vrot.slane %v974, 4
    %v976 = vadd.f32 %v974, %v975
    %v977 = vrot.slane %v976, 2
    %v978 = vadd.f32 %v976, %v977
    %v979 = vrot.slane %v978, 1
    %v980 = vadd.f32 %v978, %v979
    %v981 = vmul.f32 %v980, 0.125
    %v982 = vmul.f32 %v973, %v973
    %v983 = vsub.f32 %v981, %v982
    %v984 = vmax.f32 %v983, 0.0
    %v985 = vadd.f32 %v984, 1e-05
    %v986 = vrsqrt.pop %v985
    %v987 = vmul.f32 %v856, %v986
    %v988 = vmul.f32 %v973, %v987
    %v989 = vsub.f32 %v858, %v988
    %v991 = vlaneseq
    %v992 = vshrl.u32 %v991, 7
    %v993 = vsub.s32 0, %v992
    %v994 = vrot.slane %v987, %v993
    %v996 = vmul.f32 %v962, %v994
    %v998 = vlaneseq
    %v999 = vshrl.u32 %v998, 7
    %v1000 = vsub.s32 0, %v999
    %v1001 = vrot.slane %v989, %v1000
    %v1003 = vadd.f32 %v996, %v1001
    %v1004 = vmax.f32 %v1003, 0.0
    %v1005 = vpack.c.bf16 %v1004, %v1004
    %v1007 = vlaneseq
    %v1008 = vshrl.u32 %v1007, 7
    %v1009 = vsub.s32 0, %v1008
    %v1010 = vrot.slane %v877, %v1009
    %v1028 = vunpack.c.l.b16 %v860
    %v1029 = vunpack.c.l.b16 %v861
    %v1030 = vunpack.c.l.b16 %v862
    %v1031 = vunpack.c.l.b16 %v863
    %v1032 = vunpack.c.l.b16 %v864
    %v1033 = vunpack.c.l.b16 %v865
    %v1034 = vunpack.c.l.b16 %v866
    %v1035 = vunpack.c.l.b16 %v867
    %v1036 = vunpack.c.l.b16 %v868
    %v1037 = vunpack.c.l.b16 %v869
    %v1038 = vunpack.c.l.b16 %v870
    %v1039 = vunpack.c.l.b16 %v871
    %v1040 = vunpack.c.l.b16 %v872
    %v1041 = vunpack.c.l.b16 %v873
    %v1042 = vunpack.c.l.b16 %v874
    %v1043 = vunpack.c.l.b16 %v875
    %v1044 = vpack.c.b16 %v1029, %v1028
    %v1045 = vpack.c.b16 %v1031, %v1030
    %v1046 = vpack.c.b16 %v1033, %v1032
    %v1047 = vpack.c.b16 %v1035, %v1034
    %v1048 = vpack.c.b16 %v1037, %v1036
    %v1049 = vpack.c.b16 %v1039, %v1038
    %v1050 = vpack.c.b16 %v1041, %v1040
    %v1051 = vpack.c.b16 %v1043, %v1042
    %1060 = vmatprep.subr.bf16.mxu0 0
    %1061 = vmatpush1.bf16.msra.mxu0 %v1051
    %1062 = vmatprep.subr.bf16.mxu0 0
    %1063 = vmatpush1.bf16.msra.mxu0 %v1050
    %1064 = vmatprep.subr.bf16.mxu0 0
    %1065 = vmatpush1.bf16.msra.mxu0 %v1049
    %1066 = vmatprep.subr.bf16.mxu0 0
    %1067 = vmatpush1.bf16.msra.mxu0 %v1048
    %1068 = vmatprep.subr.bf16.mxu0 0
    %1069 = vmatpush1.bf16.msra.mxu0 %v1047
    %1070 = vmatprep.subr.bf16.mxu0 0
    %1071 = vmatpush1.bf16.msra.mxu0 %v1046
    %1072 = vmatprep.subr.bf16.mxu0 0
    %1073 = vmatpush1.bf16.msra.mxu0 %v1045
    %1074 = vmatprep.subr.bf16.mxu0 0
    %1075 = vmatpush1.bf16.msra.mxu0 %v1044
    %1076 = vmatprep.subr.bf16.mxu0 0
    %1077 = vmatpush2.bf16.msra.mxu0 0
    %1078 = vmatprep.subr.bf16.mxu0 0
    %1079 = vmatpush2.bf16.msra.mxu0 0
    %1080 = vmatprep.subr.bf16.mxu0 0
    %1081 = vmatpush2.bf16.msra.mxu0 0
    %1082 = vmatprep.subr.bf16.mxu0 0
    %1083 = vmatpush2.bf16.msra.mxu0 0
    %1084 = vmatprep.subr.bf16.mxu0 0
    %1085 = vmatpush2.bf16.msra.mxu0 0
    %1086 = vmatprep.subr.bf16.mxu0 0
    %1087 = vmatpush2.bf16.msra.mxu0 0
    %1088 = vmatprep.subr.bf16.mxu0 0
    %1089 = vmatpush2.bf16.msra.mxu0 0
    %1090 = vmatprep.subr.bf16.mxu0 0
    %1091 = vmatpush2.bf16.msra.mxu0 0
    %1092 = vmatprep.mubr.bf16.mxu0 0
    %1093 = vmatmul.mubr.bf16.gmra.mxu0 %v1005
    %v1094 = vpop.f32.mrf.mxu0
    %v1095 = vadd.f32 %v1010, %v1094
    %v1096 = vpop.f32.mrf.mxu0
    %v1097 = vpop.f32.mrf.mxu0
    %v1098 = vpop.f32.mrf.mxu0
    %1099 = vdwg.mxu0
    %v1100 = vadd.f32 %v837, %v1095
    %1101 = vst [vmem:[#allocation5] sm:$0xff] %v1100
    %s1102 = scalar_lea.vmem [#allocation6], 24
    %1103 = vst [vmem:[%s1102] sm:$0xff] %v1095
    // Predicated region
    $region30: #{residual_phi_forward.1} parent=1 // pred_check
      _
    $region31: #{residual_phi_forward.1} parent=1 // pred_check_branch
      %1105 = sbr.rel (0) target = $region33
    $region32: #{residual_phi_forward.1} parent=1 // pred_region
      %s1107 = ssub.s32 128, 128
      %1108 = vsyncadd [#allocation4], %s1107
      %s1110 = sshll.u32 [#allocation5], 4
      %s1111 = int_to_ptr.vmem [resolvable:$true] %s1110
      %1113 = dma.vmem_to_hbm [thread:$0]  %s1111, 128, %s6, [#allocation4]
    $region33: #{residual_phi_forward.1} parent=1 // pred_fallthru
      _
    // Predicated region
    $region34: #{residual_phi_forward.1} parent=1 // pred_check
      _
    $region35: #{residual_phi_forward.1} parent=1 // pred_check_branch
      %1115 = sbr.rel (0) target = $region37
    $region36: #{residual_phi_forward.1} parent=1 // pred_region
      %s1117 = ssub.s32 512, 512
      %1118 = vsyncadd [#allocation7], %s1117
      %s1119 = sshll.u32 [#allocation6], 4
      %s1120 = int_to_ptr.vmem [resolvable:$true] %s1119
      %1125 = dma.vmem_to_hbm [thread:$0]  %s1120, 512, %s7, [#allocation7], 128, 128, 8
    $region37: #{residual_phi_forward.1} parent=1 // pred_fallthru
      _
    // Predicated region
    $region38: #{residual_phi_forward.1} parent=1 // pred_check
      _
    $region39: #{residual_phi_forward.1} parent=1 // pred_check_branch
      %1127 = sbr.rel (0) target = $region41
    $region40: #{residual_phi_forward.1} parent=1 // pred_region
      %1128 = dma.done [#allocation4], 128
    $region41: #{residual_phi_forward.1} parent=1 // pred_fallthru
      _
    // Predicated region
    $region42: #{residual_phi_forward.1} parent=1 // pred_check
      _
    $region43: #{residual_phi_forward.1} parent=1 // pred_check_branch
      %1130 = sbr.rel (0) target = $region45
    $region44: #{residual_phi_forward.1} parent=1 // pred_region
      %1131 = dma.done [#allocation7], 512
    $region45: #{residual_phi_forward.1} parent=1 // pred_fallthru
      _
    %1132 = vsyncpa [#allocation3], 1
    %1133 = vsyncpa [#allocation4], 1
    %1134 = vsyncpa [#allocation7], 1

</llo_original>
